<compile_context>
chip_gen: v5e
topology: v5e:2x2
jax: 0.10.0
libtpu: 0.0.40
codegen_flags: <defaults>
</compile_context>

<pallas_src>
import functools

import jax
import jax.numpy as jnp
from jax.experimental import pallas as pl
from jax.experimental.pallas import tpu as pltpu


# ----------------------------- Pallas kernel --------------------------------


def _ln2d(x, g, b, eps=1e-5):
    """LayerNorm over the last axis of a 2-D f32 tile (PyTorch biased variance)."""
    mu = jnp.mean(x, axis=-1, keepdims=True)
    var = jnp.mean((x - mu) * (x - mu), axis=-1, keepdims=True)
    return (x - mu) * jax.lax.rsqrt(var + eps) * g + b


def fused_encoder_kernel(
    num_layers, nhead, apply_final_norm,
    x_ref,      # (S, E)  f32, one sequence (batch axis squeezed by BlockSpec)
    wqkv_ref,   # (E, 3E) bf16, in_proj_weight pre-transposed
    bqkv_ref,   # (1, 3E) f32
    wo_ref,     # (E, E)  bf16, out_proj weight pre-transposed
    bo_ref,     # (1, E)  f32
    g1_ref,     # (1, E)  f32
    b1_ref,     # (1, E)  f32
    w1_ref,     # (E, F)  bf16, linear1 weight pre-transposed
    bf1_ref,    # (1, F)  f32
    w2_ref,     # (F, E)  bf16, linear2 weight pre-transposed
    bf2_ref,    # (1, E)  f32
    g2_ref,     # (1, E)  f32
    b2_ref,     # (1, E)  f32
    gn_ref,     # (1, E)  f32, optional final norm gamma (unused if not applied)
    bn_ref,     # (1, E)  f32
    o_ref,      # (S, E)  f32
    attn_scratch,  # (S, E) f32 VMEM scratch: per-head outputs land here directly
):
    E = x_ref.shape[-1]
    Dh = E // nhead
    scale = 1.0 / float(Dh) ** 0.5
    bf16 = jnp.bfloat16

    # Weights are loaded once per program and stay live across the layer stack.
    wqkv = wqkv_ref[...]
    bqkv = bqkv_ref[...]
    wo = wo_ref[...]
    bo = bo_ref[...]
    g1 = g1_ref[...]
    b1 = b1_ref[...]
    w1 = w1_ref[...]
    bf1 = bf1_ref[...]
    w2 = w2_ref[...]
    bf2 = bf2_ref[...]
    g2 = g2_ref[...]
    b2 = b2_ref[...]

    # Activation lives in the VMEM-resident output block for the whole stack.
    o_ref[...] = x_ref[...]

    def one_layer(_, carry):
        x = o_ref[...]                                                 # (S, E) f32

        # --- QKV projection: one bf16 matmul, f32 accumulate ---
        qkv = jnp.dot(x.astype(bf16), wqkv,
                      preferred_element_type=jnp.float32) + bqkv       # (S, 3E)

        # --- per-head scaled-dot-product attention ---
        # Each head's output goes straight into the (S, E) scratch slab (no
        # lists, no concatenates).  nhead is small; batch is the grid axis.
        for h in range(nhead):
            q = qkv[:, h * Dh:(h + 1) * Dh].astype(bf16)               # (S, Dh)
            k = qkv[:, E + h * Dh:E + (h + 1) * Dh].astype(bf16)       # (S, Dh)
            v = qkv[:, 2 * E + h * Dh:2 * E + (h + 1) * Dh].astype(bf16)

            s = jax.lax.dot_general(                                   # q @ k^T
                q, k, (((1,), (1,)), ((), ())),
                preferred_element_type=jnp.float32) * scale            # (S, S) f32
            s = s - jnp.max(s, axis=-1, keepdims=True)
            p = jnp.exp(s)
            inv = pl.reciprocal(jnp.sum(p, axis=-1, keepdims=True), approx=True)
            a = (p * inv).astype(bf16)
            attn_scratch[:, h * Dh:(h + 1) * Dh] = jnp.dot(
                a, v, preferred_element_type=jnp.float32)

        # --- single out-projection matmul over all heads ---
        attn = jnp.dot(attn_scratch[...].astype(bf16), wo,
                       preferred_element_type=jnp.float32) + bo        # (S, E)

        # --- residual + norm1 (f32) ---
        y = _ln2d(x + attn, g1, b1)

        # --- feed forward: linear -> relu -> linear (bf16 MXU, f32 acc) ---
        h1 = jnp.maximum(
            jnp.dot(y.astype(bf16), w1, preferred_element_type=jnp.float32) + bf1,
            0.0)
        ff = jnp.dot(h1.astype(bf16), w2,
                     preferred_element_type=jnp.float32) + bf2

        # --- residual + norm2 (f32) ---
        o_ref[...] = _ln2d(y + ff, g2, b2)
        return carry

    jax.lax.fori_loop(0, num_layers, one_layer, 0)

    if apply_final_norm:
        o_ref[...] = _ln2d(o_ref[...], gn_ref[...], bn_ref[...])


# ------------------------------ JAX wrapper ----------------------------------


def _const_spec(shape):
    """Full-array block, same block every grid step -> DMA'd once, VMEM-resident."""
    n = len(shape)
    return pl.BlockSpec(shape, lambda b, _n=n: (0,) * _n)


def self_transformer_encoder(x, layer_params, num_layers, nhead, norm_params=None):
    """Matches SelfTransformerEncoder.forward: N deep-copied layers + optional norm."""
    S, B, E = x.shape
    p = layer_params
    F = p["w1"].shape[0]
    bf16 = jnp.bfloat16

    # (S, B, E) -> (B, S, E): one whole sequence per grid step (lane-dense E last).
    x_bse = jnp.transpose(x, (1, 0, 2)).astype(jnp.float32)

    if norm_params is not None:
        gn = norm_params["g"].reshape(1, E).astype(jnp.float32)
        bn = norm_params["b"].reshape(1, E).astype(jnp.float32)
        apply_final_norm = True
    else:
        gn = jnp.ones((1, E), jnp.float32)
        bn = jnp.zeros((1, E), jnp.float32)
        apply_final_norm = False

    args = (
        x_bse,                                    # (B, S, E) f32
        p["wqkv"].T.astype(bf16),                 # (E, 3E)
        p["bqkv"].reshape(1, -1).astype(jnp.float32),
        p["wo"].T.astype(bf16),                   # (E, E)
        p["bo"].reshape(1, -1).astype(jnp.float32),
        p["g1"].reshape(1, -1).astype(jnp.float32),
        p["b1"].reshape(1, -1).astype(jnp.float32),
        p["w1"].T.astype(bf16),                   # (E, F)
        p["bf1"].reshape(1, -1).astype(jnp.float32),
        p["w2"].T.astype(bf16),                   # (F, E)
        p["bf2"].reshape(1, -1).astype(jnp.float32),
        p["g2"].reshape(1, -1).astype(jnp.float32),
        p["b2"].reshape(1, -1).astype(jnp.float32),
        gn, bn,
    )

    in_specs = [
        # Activation: one sequence per program, batch axis squeezed.
        pl.BlockSpec((None, S, E), lambda b: (b, 0, 0)),
        _const_spec((E, 3 * E)),
        _const_spec((1, 3 * E)),
        _const_spec((E, E)),
        _const_spec((1, E)),
        _const_spec((1, E)), _const_spec((1, E)),
        _const_spec((E, F)),
        _const_spec((1, F)),
        _const_spec((F, E)),
        _const_spec((1, E)),
        _const_spec((1, E)), _const_spec((1, E)),
        _const_spec((1, E)), _const_spec((1, E)),
    ]
    out_spec = pl.BlockSpec((None, S, E), lambda b: (b, 0, 0))

    # Advisory cost estimate so XLA schedules surrounding ops sensibly.
    weight_bytes = sum(int(a.size) * a.dtype.itemsize for a in args[1:])
    cost = pl.CostEstimate(
        flops=int(num_layers * (B * S * (2 * E * 3 * E + 2 * E * E + 4 * E * F)
                                + B * 4 * S * S * E)),
        transcendentals=int(num_layers * B * nhead * S * S),
        bytes_accessed=int(weight_bytes + 2 * B * S * E * 4),
    )

    out_bse = pl.pallas_call(
        functools.partial(fused_encoder_kernel, num_layers, nhead, apply_final_norm),
        out_shape=jax.ShapeDtypeStruct((B, S, E), jnp.float32),
        grid_spec=pltpu.PrefetchScalarGridSpec(
            num_scalar_prefetch=0,
            grid=(B,),
            in_specs=in_specs,
            out_specs=out_spec,
            scratch_shapes=[pltpu.VMEM((S, E), jnp.float32)],
        ),
        compiler_params=pltpu.CompilerParams(
            dimension_semantics=("parallel",),          # megacore over batch on v7x
            vmem_limit_bytes=32 * 1024 * 1024,          # explicit budget, v7x-safe
        ),
        cost_estimate=cost,
        input_output_aliases={0: 0},    # activation input aliases the output buffer
    )(*args)

    return jnp.transpose(out_bse, (1, 0, 2))


# --------------------------- pure-JAX reference ------------------------------


def _ref_layer(x, p, nhead):
    S, B, E = x.shape
    Dh = E // nhead
    x2 = x.reshape(S * B, E)
    qkv = x2 @ p["wqkv"].T + p["bqkv"]
    q, k, v = jnp.split(qkv, 3, axis=-1)

    def heads(t):
        return t.reshape(S, B, nhead, Dh).transpose(1, 2, 0, 3)  # (B, H, S, Dh)

    q, k, v = heads(q), heads(k), heads(v)
    s = jnp.einsum("bhsd,bhtd->bhst", q, k) / jnp.sqrt(jnp.float32(Dh))
    a = jax.nn.softmax(s, axis=-1)
    o = jnp.einsum("bhst,bhtd->bhsd", a, v)
    o = o.transpose(2, 0, 1, 3).reshape(S * B, E)
    attn = o @ p["wo"].T + p["bo"]

    def ln(t, g, b):
        mu = jnp.mean(t, axis=-1, keepdims=True)
        var = jnp.mean((t - mu) ** 2, axis=-1, keepdims=True)
        return (t - mu) / jnp.sqrt(var + 1e-5) * g + b

    y = ln(x2 + attn, p["g1"], p["b1"])
    ff = jnp.maximum(y @ p["w1"].T + p["bf1"], 0.0) @ p["w2"].T + p["bf2"]
    z = ln(y + ff, p["g2"], p["b2"])
    return z.reshape(S, B, E)


def _ref_encoder(x, p, num_layers, nhead, norm_params):
    out = x
    for _ in range(num_layers):
        out = _ref_layer(out, p, nhead)
    if norm_params is not None:
        mu = jnp.mean(out, axis=-1, keepdims=True)
        var = jnp.mean((out - mu) ** 2, axis=-1, keepdims=True)
        out = (out - mu) / jnp.sqrt(var + 1e-5) * norm_params["g"] + norm_params["b"]
    return out


# ----------------------------------- main ------------------------------------


if __name__ == "__main__":
    S, B, E = 8, 2, 32          # seq, batch, d_model
    NHEAD = 4
    FF = 64                     # dim_feedforward
    NUM_LAYERS = 2

    key = jax.random.PRNGKey(0)
    ks = jax.random.split(key, 8)

    # One set of layer weights, reused for every layer (deepcopy semantics).
    layer_params = {
        "wqkv": 0.05 * jax.random.normal(ks[0], (3 * E, E), jnp.float32),
        "bqkv": 0.01 * jax.random.normal(ks[1], (3 * E,), jnp.float32),
        "wo":   0.05 * jax.random.normal(ks[2], (E, E), jnp.float32),
        "bo":   0.01 * jax.random.normal(ks[3], (E,), jnp.float32),
        "g1":   jnp.ones((E,), jnp.float32),
        "b1":   jnp.zeros((E,), jnp.float32),
        "w1":   0.05 * jax.random.normal(ks[4], (FF, E), jnp.float32),
        "bf1":  0.01 * jax.random.normal(ks[5], (FF,), jnp.float32),
        "w2":   0.05 * jax.random.normal(ks[6], (E, FF), jnp.float32),
        "bf2":  0.01 * jax.random.normal(ks[7], (E,), jnp.float32),
        "g2":   jnp.ones((E,), jnp.float32),
        "b2":   jnp.zeros((E,), jnp.float32),
    }
    norm_params = {"g": jnp.ones((E,), jnp.float32), "b": jnp.zeros((E,), jnp.float32)}

    x = jax.random.normal(jax.random.PRNGKey(42), (S, B, E), jnp.float32)

    encoder = jax.jit(functools.partial(
        self_transformer_encoder, num_layers=NUM_LAYERS, nhead=NHEAD))
    out = encoder(x, layer_params, norm_params=norm_params)
    out = jax.block_until_ready(out)

    ref = _ref_encoder(x, layer_params, NUM_LAYERS, NHEAD, norm_params)
    assert out.shape == (S, B, E)
    # Tolerance accounts for bf16 MXU operands (f32 accumulate) and the
    # approximate-reciprocal softmax normalization.
    assert jnp.allclose(out, ref, rtol=2e-2, atol=2e-2), "mismatch vs JAX reference"

    print("KERNEL_OK")
</pallas_src>

<mosaic_0001>
module attributes {stable_mosaic.version = 11 : i64} {
  func.func @fused_encoder_kernel(%arg0: i32, %arg1: memref<1x8x32xf32, #tpu.memory_space<vmem>>, %arg2: memref<32x96xbf16, #tpu.memory_space<vmem>>, %arg3: memref<1x96xf32, #tpu.memory_space<vmem>>, %arg4: memref<32x32xbf16, #tpu.memory_space<vmem>>, %arg5: memref<1x32xf32, #tpu.memory_space<vmem>>, %arg6: memref<1x32xf32, #tpu.memory_space<vmem>>, %arg7: memref<1x32xf32, #tpu.memory_space<vmem>>, %arg8: memref<32x64xbf16, #tpu.memory_space<vmem>>, %arg9: memref<1x64xf32, #tpu.memory_space<vmem>>, %arg10: memref<64x32xbf16, #tpu.memory_space<vmem>>, %arg11: memref<1x32xf32, #tpu.memory_space<vmem>>, %arg12: memref<1x32xf32, #tpu.memory_space<vmem>>, %arg13: memref<1x32xf32, #tpu.memory_space<vmem>>, %arg14: memref<1x32xf32, #tpu.memory_space<vmem>>, %arg15: memref<1x32xf32, #tpu.memory_space<vmem>>, %arg16: memref<1x8x32xf32, #tpu.memory_space<vmem>>, %arg17: memref<8x32xf32, #tpu.memory_space<vmem>>) attributes {dimension_semantics = [#tpu.dimension_semantics<parallel>], iteration_bounds = array<i64: 2>, scalar_prefetch = 0 : i64, scratch_operands = 1 : i64, tpu.core_type = #tpu.core_type<tc>, window_params = [{transform_indices = @transform_0, window_bounds = array<i64: 1, 8, 32>}, {pipeline_mode = #tpu.pipeline_mode<synchronous>, transform_indices = @transform_1, window_bounds = array<i64: 32, 96>}, {pipeline_mode = #tpu.pipeline_mode<synchronous>, transform_indices = @transform_2, window_bounds = array<i64: 1, 96>}, {pipeline_mode = #tpu.pipeline_mode<synchronous>, transform_indices = @transform_3, window_bounds = array<i64: 32, 32>}, {pipeline_mode = #tpu.pipeline_mode<synchronous>, transform_indices = @transform_4, window_bounds = array<i64: 1, 32>}, {pipeline_mode = #tpu.pipeline_mode<synchronous>, transform_indices = @transform_5, window_bounds = array<i64: 1, 32>}, {pipeline_mode = #tpu.pipeline_mode<synchronous>, transform_indices = @transform_6, window_bounds = array<i64: 1, 32>}, {pipeline_mode = #tpu.pipeline_mode<synchronous>, transform_indices = @transform_7, window_bounds = array<i64: 32, 64>}, {pipeline_mode = #tpu.pipeline_mode<synchronous>, transform_indices = @transform_8, window_bounds = array<i64: 1, 64>}, {pipeline_mode = #tpu.pipeline_mode<synchronous>, transform_indices = @transform_9, window_bounds = array<i64: 64, 32>}, {pipeline_mode = #tpu.pipeline_mode<synchronous>, transform_indices = @transform_10, window_bounds = array<i64: 1, 32>}, {pipeline_mode = #tpu.pipeline_mode<synchronous>, transform_indices = @transform_11, window_bounds = array<i64: 1, 32>}, {pipeline_mode = #tpu.pipeline_mode<synchronous>, transform_indices = @transform_12, window_bounds = array<i64: 1, 32>}, {pipeline_mode = #tpu.pipeline_mode<synchronous>, transform_indices = @transform_13, window_bounds = array<i64: 1, 32>}, {pipeline_mode = #tpu.pipeline_mode<synchronous>, transform_indices = @transform_14, window_bounds = array<i64: 1, 32>}, {transform_indices = @transform_15, window_bounds = array<i64: 1, 8, 32>}]} {
    %c0 = arith.constant 0 : index
    %c0_0 = arith.constant 0 : index
    %0 = vector.load %arg2[%c0, %c0_0] : memref<32x96xbf16, #tpu.memory_space<vmem>>, vector<32x96xbf16>
    %c0_1 = arith.constant 0 : index
    %c0_2 = arith.constant 0 : index
    %1 = vector.load %arg3[%c0_1, %c0_2] : memref<1x96xf32, #tpu.memory_space<vmem>>, vector<1x96xf32>
    %c0_3 = arith.constant 0 : index
    %c0_4 = arith.constant 0 : index
    %2 = vector.load %arg4[%c0_3, %c0_4] : memref<32x32xbf16, #tpu.memory_space<vmem>>, vector<32x32xbf16>
    %c0_5 = arith.constant 0 : index
    %c0_6 = arith.constant 0 : index
    %3 = vector.load %arg5[%c0_5, %c0_6] : memref<1x32xf32, #tpu.memory_space<vmem>>, vector<1x32xf32>
    %c0_7 = arith.constant 0 : index
    %c0_8 = arith.constant 0 : index
    %4 = vector.load %arg6[%c0_7, %c0_8] : memref<1x32xf32, #tpu.memory_space<vmem>>, vector<1x32xf32>
    %c0_9 = arith.constant 0 : index
    %c0_10 = arith.constant 0 : index
    %5 = vector.load %arg7[%c0_9, %c0_10] : memref<1x32xf32, #tpu.memory_space<vmem>>, vector<1x32xf32>
    %c0_11 = arith.constant 0 : index
    %c0_12 = arith.constant 0 : index
    %6 = vector.load %arg8[%c0_11, %c0_12] : memref<32x64xbf16, #tpu.memory_space<vmem>>, vector<32x64xbf16>
    %c0_13 = arith.constant 0 : index
    %c0_14 = arith.constant 0 : index
    %7 = vector.load %arg9[%c0_13, %c0_14] : memref<1x64xf32, #tpu.memory_space<vmem>>, vector<1x64xf32>
    %c0_15 = arith.constant 0 : index
    %c0_16 = arith.constant 0 : index
    %8 = vector.load %arg10[%c0_15, %c0_16] : memref<64x32xbf16, #tpu.memory_space<vmem>>, vector<64x32xbf16>
    %c0_17 = arith.constant 0 : index
    %c0_18 = arith.constant 0 : index
    %9 = vector.load %arg11[%c0_17, %c0_18] : memref<1x32xf32, #tpu.memory_space<vmem>>, vector<1x32xf32>
    %c0_19 = arith.constant 0 : index
    %c0_20 = arith.constant 0 : index
    %10 = vector.load %arg12[%c0_19, %c0_20] : memref<1x32xf32, #tpu.memory_space<vmem>>, vector<1x32xf32>
    %c0_21 = arith.constant 0 : index
    %c0_22 = arith.constant 0 : index
    %11 = vector.load %arg13[%c0_21, %c0_22] : memref<1x32xf32, #tpu.memory_space<vmem>>, vector<1x32xf32>
    %c0_23 = arith.constant 0 : index
    %c0_24 = arith.constant 0 : index
    %c0_25 = arith.constant 0 : index
    %12 = vector.load %arg1[%c0_23, %c0_24, %c0_25] : memref<1x8x32xf32, #tpu.memory_space<vmem>>, vector<1x8x32xf32>
    %13 = vector.shape_cast %12 : vector<1x8x32xf32> to vector<8x32xf32>
    %c0_26 = arith.constant 0 : index
    %c0_27 = arith.constant 0 : index
    %c0_28 = arith.constant 0 : index
    %14 = vector.load %arg16[%c0_26, %c0_27, %c0_28] : memref<1x8x32xf32, #tpu.memory_space<vmem>>, vector<1x8x32xf32>
    %15 = vector.shape_cast %14 : vector<1x8x32xf32> to vector<8x32xf32>
    %16 = vector.shape_cast %13 : vector<8x32xf32> to vector<1x8x32xf32>
    tpu.vector_store %arg16[%c0_26, %c0_27, %c0_28], %16 {strides = array<i32>} : memref<1x8x32xf32, #tpu.memory_space<vmem>>, vector<1x8x32xf32>,
    %c0_i32 = arith.constant 0 : i32
    %c2_i32 = arith.constant 2 : i32
    %17 = arith.addi %c0_i32, %c2_i32 : i32
    %c1_i32 = arith.constant 1 : i32
    scf.for %arg18 = %c0_i32 to %17 step %c1_i32  : i32 {
      %c0_43 = arith.constant 0 : index
      %c0_44 = arith.constant 0 : index
      %c0_45 = arith.constant 0 : index
      %49 = vector.load %arg16[%c0_43, %c0_44, %c0_45] : memref<1x8x32xf32, #tpu.memory_space<vmem>>, vector<1x8x32xf32>
      %50 = vector.shape_cast %49 : vector<1x8x32xf32> to vector<8x32xf32>
      %51 = arith.truncf %50 : vector<8x32xf32> to vector<8x32xbf16>
      %cst_46 = arith.constant dense<0.000000e+00> : vector<8x96xf32>
      %52 = tpu.matmul %51, %0, %cst_46 {dimension_numbers = #tpu.dot_dimension_numbers<[1], [0], [0], [1], [0, 0, 1, 1], [], []>} : vector<8x32xbf16>, vector<32x96xbf16>, vector<8x96xf32> -> vector<8x96xf32>
      %53 = vector.broadcast %1 : vector<1x96xf32> to vector<8x96xf32>
      %54 = arith.addf %52, %53 : vector<8x96xf32>
      %55 = vector.extract_strided_slice %54 {offsets = [0, 0], sizes = [8, 8], strides = [1, 1]} : vector<8x96xf32> to vector<8x8xf32>
      %56 = arith.truncf %55 : vector<8x8xf32> to vector<8x8xbf16>
      %57 = vector.extract_strided_slice %54 {offsets = [0, 32], sizes = [8, 8], strides = [1, 1]} : vector<8x96xf32> to vector<8x8xf32>
      %58 = arith.truncf %57 : vector<8x8xf32> to vector<8x8xbf16>
      %59 = vector.extract_strided_slice %54 {offsets = [0, 64], sizes = [8, 8], strides = [1, 1]} : vector<8x96xf32> to vector<8x8xf32>
      %60 = arith.truncf %59 : vector<8x8xf32> to vector<8x8xbf16>
      %cst_47 = arith.constant dense<0.000000e+00> : vector<8x8xf32>
      %61 = tpu.matmul %56, %58, %cst_47 {dimension_numbers = #tpu.dot_dimension_numbers<[1], [1], [0], [0], [0, 0, 1, 0], [], []>} : vector<8x8xbf16>, vector<8x8xbf16>, vector<8x8xf32> -> vector<8x8xf32>
      %cst_48 = arith.constant 0.353553385 : f32
      %62 = vector.broadcast %cst_48 : f32 to vector<8x8xf32>
      %63 = arith.mulf %61, %62 : vector<8x8xf32>
      %cst_49 = arith.constant dense<0xFF800000> : vector<8xf32>
      %64 = vector.multi_reduction <maximumf>, %63, %cst_49 [1] : vector<8x8xf32> to vector<8xf32>
      %65 = vector.shape_cast %64 : vector<8xf32> to vector<8x1xf32>
      %66 = vector.broadcast %65 : vector<8x1xf32> to vector<8x8xf32>
      %67 = arith.subf %63, %66 : vector<8x8xf32>
      %68 = math.exp %67 : vector<8x8xf32>
      %cst_50 = arith.constant dense<0.000000e+00> : vector<8xf32>
      %69 = vector.multi_reduction <add>, %68, %cst_50 [1] : vector<8x8xf32> to vector<8xf32>
      %70 = vector.shape_cast %69 : vector<8xf32> to vector<8x1xf32>
      %71 = tpu.reciprocal %70 {approx = true} : vector<8x1xf32> -> vector<8x1xf32>
      %72 = vector.broadcast %71 : vector<8x1xf32> to vector<8x8xf32>
      %73 = arith.mulf %68, %72 : vector<8x8xf32>
      %74 = arith.truncf %73 : vector<8x8xf32> to vector<8x8xbf16>
      %cst_51 = arith.constant dense<0.000000e+00> : vector<8x8xf32>
      %75 = tpu.matmul %74, %60, %cst_51 {dimension_numbers = #tpu.dot_dimension_numbers<[1], [0], [0], [1], [0, 0, 1, 1], [], []>} : vector<8x8xbf16>, vector<8x8xbf16>, vector<8x8xf32> -> vector<8x8xf32>
      %c0_52 = arith.constant 0 : index
      %c0_53 = arith.constant 0 : index
      %76 = vector.load %arg17[%c0_52, %c0_53] : memref<8x32xf32, #tpu.memory_space<vmem>>, vector<8x8xf32>
      tpu.vector_store %arg17[%c0_52, %c0_53], %75 {strides = array<i32>} : memref<8x32xf32, #tpu.memory_space<vmem>>, vector<8x8xf32>,
      %77 = vector.extract_strided_slice %54 {offsets = [0, 8], sizes = [8, 8], strides = [1, 1]} : vector<8x96xf32> to vector<8x8xf32>
      %78 = arith.truncf %77 : vector<8x8xf32> to vector<8x8xbf16>
      %79 = vector.extract_strided_slice %54 {offsets = [0, 40], sizes = [8, 8], strides = [1, 1]} : vector<8x96xf32> to vector<8x8xf32>
      %80 = arith.truncf %79 : vector<8x8xf32> to vector<8x8xbf16>
      %81 = vector.extract_strided_slice %54 {offsets = [0, 72], sizes = [8, 8], strides = [1, 1]} : vector<8x96xf32> to vector<8x8xf32>
      %82 = arith.truncf %81 : vector<8x8xf32> to vector<8x8xbf16>
      %cst_54 = arith.constant dense<0.000000e+00> : vector<8x8xf32>
      %83 = tpu.matmul %78, %80, %cst_54 {dimension_numbers = #tpu.dot_dimension_numbers<[1], [1], [0], [0], [0, 0, 1, 0], [], []>} : vector<8x8xbf16>, vector<8x8xbf16>, vector<8x8xf32> -> vector<8x8xf32>
      %cst_55 = arith.constant 0.353553385 : f32
      %84 = vector.broadcast %cst_55 : f32 to vector<8x8xf32>
      %85 = arith.mulf %83, %84 : vector<8x8xf32>
      %cst_56 = arith.constant dense<0xFF800000> : vector<8xf32>
      %86 = vector.multi_reduction <maximumf>, %85, %cst_56 [1] : vector<8x8xf32> to vector<8xf32>
      %87 = vector.shape_cast %86 : vector<8xf32> to vector<8x1xf32>
      %88 = vector.broadcast %87 : vector<8x1xf32> to vector<8x8xf32>
      %89 = arith.subf %85, %88 : vector<8x8xf32>
      %90 = math.exp %89 : vector<8x8xf32>
      %cst_57 = arith.constant dense<0.000000e+00> : vector<8xf32>
      %91 = vector.multi_reduction <add>, %90, %cst_57 [1] : vector<8x8xf32> to vector<8xf32>
      %92 = vector.shape_cast %91 : vector<8xf32> to vector<8x1xf32>
      %93 = tpu.reciprocal %92 {approx = true} : vector<8x1xf32> -> vector<8x1xf32>
      %94 = vector.broadcast %93 : vector<8x1xf32> to vector<8x8xf32>
      %95 = arith.mulf %90, %94 : vector<8x8xf32>
      %96 = arith.truncf %95 : vector<8x8xf32> to vector<8x8xbf16>
      %cst_58 = arith.constant dense<0.000000e+00> : vector<8x8xf32>
      %97 = tpu.matmul %96, %82, %cst_58 {dimension_numbers = #tpu.dot_dimension_numbers<[1], [0], [0], [1], [0, 0, 1, 1], [], []>} : vector<8x8xbf16>, vector<8x8xbf16>, vector<8x8xf32> -> vector<8x8xf32>
      %c0_59 = arith.constant 0 : index
      %c8 = arith.constant 8 : index
      %98 = vector.load %arg17[%c0_59, %c8] : memref<8x32xf32, #tpu.memory_space<vmem>>, vector<8x8xf32>
      tpu.vector_store %arg17[%c0_59, %c8], %97 {strides = array<i32>} : memref<8x32xf32, #tpu.memory_space<vmem>>, vector<8x8xf32>,
      %99 = vector.extract_strided_slice %54 {offsets = [0, 16], sizes = [8, 8], strides = [1, 1]} : vector<8x96xf32> to vector<8x8xf32>
      %100 = arith.truncf %99 : vector<8x8xf32> to vector<8x8xbf16>
      %101 = vector.extract_strided_slice %54 {offsets = [0, 48], sizes = [8, 8], strides = [1, 1]} : vector<8x96xf32> to vector<8x8xf32>
      %102 = arith.truncf %101 : vector<8x8xf32> to vector<8x8xbf16>
      %103 = vector.extract_strided_slice %54 {offsets = [0, 80], sizes = [8, 8], strides = [1, 1]} : vector<8x96xf32> to vector<8x8xf32>
      %104 = arith.truncf %103 : vector<8x8xf32> to vector<8x8xbf16>
      %cst_60 = arith.constant dense<0.000000e+00> : vector<8x8xf32>
      %105 = tpu.matmul %100, %102, %cst_60 {dimension_numbers = #tpu.dot_dimension_numbers<[1], [1], [0], [0], [0, 0, 1, 0], [], []>} : vector<8x8xbf16>, vector<8x8xbf16>, vector<8x8xf32> -> vector<8x8xf32>
      %cst_61 = arith.constant 0.353553385 : f32
      %106 = vector.broadcast %cst_61 : f32 to vector<8x8xf32>
      %107 = arith.mulf %105, %106 : vector<8x8xf32>
      %cst_62 = arith.constant dense<0xFF800000> : vector<8xf32>
      %108 = vector.multi_reduction <maximumf>, %107, %cst_62 [1] : vector<8x8xf32> to vector<8xf32>
      %109 = vector.shape_cast %108 : vector<8xf32> to vector<8x1xf32>
      %110 = vector.broadcast %109 : vector<8x1xf32> to vector<8x8xf32>
      %111 = arith.subf %107, %110 : vector<8x8xf32>
      %112 = math.exp %111 : vector<8x8xf32>
      %cst_63 = arith.constant dense<0.000000e+00> : vector<8xf32>
      %113 = vector.multi_reduction <add>, %112, %cst_63 [1] : vector<8x8xf32> to vector<8xf32>
      %114 = vector.shape_cast %113 : vector<8xf32> to vector<8x1xf32>
      %115 = tpu.reciprocal %114 {approx = true} : vector<8x1xf32> -> vector<8x1xf32>
      %116 = vector.broadcast %115 : vector<8x1xf32> to vector<8x8xf32>
      %117 = arith.mulf %112, %116 : vector<8x8xf32>
      %118 = arith.truncf %117 : vector<8x8xf32> to vector<8x8xbf16>
      %cst_64 = arith.constant dense<0.000000e+00> : vector<8x8xf32>
      %119 = tpu.matmul %118, %104, %cst_64 {dimension_numbers = #tpu.dot_dimension_numbers<[1], [0], [0], [1], [0, 0, 1, 1], [], []>} : vector<8x8xbf16>, vector<8x8xbf16>, vector<8x8xf32> -> vector<8x8xf32>
      %c0_65 = arith.constant 0 : index
      %c16 = arith.constant 16 : index
      %120 = vector.load %arg17[%c0_65, %c16] : memref<8x32xf32, #tpu.memory_space<vmem>>, vector<8x8xf32>
      tpu.vector_store %arg17[%c0_65, %c16], %119 {strides = array<i32>} : memref<8x32xf32, #tpu.memory_space<vmem>>, vector<8x8xf32>,
      %121 = vector.extract_strided_slice %54 {offsets = [0, 24], sizes = [8, 8], strides = [1, 1]} : vector<8x96xf32> to vector<8x8xf32>
      %122 = arith.truncf %121 : vector<8x8xf32> to vector<8x8xbf16>
      %123 = vector.extract_strided_slice %54 {offsets = [0, 56], sizes = [8, 8], strides = [1, 1]} : vector<8x96xf32> to vector<8x8xf32>
      %124 = arith.truncf %123 : vector<8x8xf32> to vector<8x8xbf16>
      %125 = vector.extract_strided_slice %54 {offsets = [0, 88], sizes = [8, 8], strides = [1, 1]} : vector<8x96xf32> to vector<8x8xf32>
      %126 = arith.truncf %125 : vector<8x8xf32> to vector<8x8xbf16>
      %cst_66 = arith.constant dense<0.000000e+00> : vector<8x8xf32>
      %127 = tpu.matmul %122, %124, %cst_66 {dimension_numbers = #tpu.dot_dimension_numbers<[1], [1], [0], [0], [0, 0, 1, 0], [], []>} : vector<8x8xbf16>, vector<8x8xbf16>, vector<8x8xf32> -> vector<8x8xf32>
      %cst_67 = arith.constant 0.353553385 : f32
      %128 = vector.broadcast %cst_67 : f32 to vector<8x8xf32>
      %129 = arith.mulf %127, %128 : vector<8x8xf32>
      %cst_68 = arith.constant dense<0xFF800000> : vector<8xf32>
      %130 = vector.multi_reduction <maximumf>, %129, %cst_68 [1] : vector<8x8xf32> to vector<8xf32>
      %131 = vector.shape_cast %130 : vector<8xf32> to vector<8x1xf32>
      %132 = vector.broadcast %131 : vector<8x1xf32> to vector<8x8xf32>
      %133 = arith.subf %129, %132 : vector<8x8xf32>
      %134 = math.exp %133 : vector<8x8xf32>
      %cst_69 = arith.constant dense<0.000000e+00> : vector<8xf32>
      %135 = vector.multi_reduction <add>, %134, %cst_69 [1] : vector<8x8xf32> to vector<8xf32>
      %136 = vector.shape_cast %135 : vector<8xf32> to vector<8x1xf32>
      %137 = tpu.reciprocal %136 {approx = true} : vector<8x1xf32> -> vector<8x1xf32>
      %138 = vector.broadcast %137 : vector<8x1xf32> to vector<8x8xf32>
      %139 = arith.mulf %134, %138 : vector<8x8xf32>
      %140 = arith.truncf %139 : vector<8x8xf32> to vector<8x8xbf16>
      %cst_70 = arith.constant dense<0.000000e+00> : vector<8x8xf32>
      %141 = tpu.matmul %140, %126, %cst_70 {dimension_numbers = #tpu.dot_dimension_numbers<[1], [0], [0], [1], [0, 0, 1, 1], [], []>} : vector<8x8xbf16>, vector<8x8xbf16>, vector<8x8xf32> -> vector<8x8xf32>
      %c0_71 = arith.constant 0 : index
      %c24 = arith.constant 24 : index
      %142 = vector.load %arg17[%c0_71, %c24] : memref<8x32xf32, #tpu.memory_space<vmem>>, vector<8x8xf32>
      tpu.vector_store %arg17[%c0_71, %c24], %141 {strides = array<i32>} : memref<8x32xf32, #tpu.memory_space<vmem>>, vector<8x8xf32>,
      %c0_72 = arith.constant 0 : index
      %c0_73 = arith.constant 0 : index
      %143 = vector.load %arg17[%c0_72, %c0_73] : memref<8x32xf32, #tpu.memory_space<vmem>>, vector<8x32xf32>
      %144 = arith.truncf %143 : vector<8x32xf32> to vector<8x32xbf16>
      %cst_74 = arith.constant dense<0.000000e+00> : vector<8x32xf32>
      %145 = tpu.matmul %144, %2, %cst_74 {dimension_numbers = #tpu.dot_dimension_numbers<[1], [0], [0], [1], [0, 0, 1, 1], [], []>} : vector<8x32xbf16>, vector<32x32xbf16>, vector<8x32xf32> -> vector<8x32xf32>
      %146 = vector.broadcast %3 : vector<1x32xf32> to vector<8x32xf32>
      %147 = arith.addf %145, %146 : vector<8x32xf32>
      %148 = arith.addf %50, %147 : vector<8x32xf32>
      %cst_75 = arith.constant dense<0.000000e+00> : vector<8xf32>
      %149 = vector.multi_reduction <add>, %148, %cst_75 [1] : vector<8x32xf32> to vector<8xf32>
      %150 = vector.shape_cast %149 : vector<8xf32> to vector<8x1xf32>
      %cst_76 = arith.constant 3.200000e+01 : f32
      %151 = vector.broadcast %cst_76 : f32 to vector<8x1xf32>
      %152 = arith.divf %150, %151 : vector<8x1xf32>
      %153 = vector.broadcast %152 : vector<8x1xf32> to vector<8x32xf32>
      %154 = arith.subf %148, %153 : vector<8x32xf32>
      %155 = vector.broadcast %152 : vector<8x1xf32> to vector<8x32xf32>
      %156 = arith.subf %148, %155 : vector<8x32xf32>
      %157 = arith.mulf %154, %156 : vector<8x32xf32>
      %cst_77 = arith.constant dense<0.000000e+00> : vector<8xf32>
      %158 = vector.multi_reduction <add>, %157, %cst_77 [1] : vector<8x32xf32> to vector<8xf32>
      %159 = vector.shape_cast %158 : vector<8xf32> to vector<8x1xf32>
      %cst_78 = arith.constant 3.200000e+01 : f32
      %160 = vector.broadcast %cst_78 : f32 to vector<8x1xf32>
      %161 = arith.divf %159, %160 : vector<8x1xf32>
      %162 = vector.broadcast %152 : vector<8x1xf32> to vector<8x32xf32>
      %163 = arith.subf %148, %162 : vector<8x32xf32>
      %cst_79 = arith.constant 9.99999974E-6 : f32
      %164 = vector.broadcast %cst_79 : f32 to vector<8x1xf32>
      %165 = arith.addf %161, %164 : vector<8x1xf32>
      %166 = math.rsqrt %165 : vector<8x1xf32>
      %167 = vector.broadcast %166 : vector<8x1xf32> to vector<8x32xf32>
      %168 = arith.mulf %163, %167 : vector<8x32xf32>
      %169 = vector.broadcast %4 : vector<1x32xf32> to vector<8x32xf32>
      %170 = arith.mulf %168, %169 : vector<8x32xf32>
      %171 = vector.broadcast %5 : vector<1x32xf32> to vector<8x32xf32>
      %172 = arith.addf %170, %171 : vector<8x32xf32>
      %173 = arith.truncf %172 : vector<8x32xf32> to vector<8x32xbf16>
      %cst_80 = arith.constant dense<0.000000e+00> : vector<8x64xf32>
      %174 = tpu.matmul %173, %6, %cst_80 {dimension_numbers = #tpu.dot_dimension_numbers<[1], [0], [0], [1], [0, 0, 1, 1], [], []>} : vector<8x32xbf16>, vector<32x64xbf16>, vector<8x64xf32> -> vector<8x64xf32>
      %175 = vector.broadcast %7 : vector<1x64xf32> to vector<8x64xf32>
      %176 = arith.addf %174, %175 : vector<8x64xf32>
      %cst_81 = arith.constant 0.000000e+00 : f32
      %177 = vector.broadcast %cst_81 : f32 to vector<8x64xf32>
      %178 = arith.maximumf %176, %177 : vector<8x64xf32>
      %179 = arith.truncf %178 : vector<8x64xf32> to vector<8x64xbf16>
      %cst_82 = arith.constant dense<0.000000e+00> : vector<8x32xf32>
      %180 = tpu.matmul %179, %8, %cst_82 {dimension_numbers = #tpu.dot_dimension_numbers<[1], [0], [0], [1], [0, 0, 1, 1], [], []>} : vector<8x64xbf16>, vector<64x32xbf16>, vector<8x32xf32> -> vector<8x32xf32>
      %181 = vector.broadcast %9 : vector<1x32xf32> to vector<8x32xf32>
      %182 = arith.addf %180, %181 : vector<8x32xf32>
      %183 = arith.addf %172, %182 : vector<8x32xf32>
      %cst_83 = arith.constant dense<0.000000e+00> : vector<8xf32>
      %184 = vector.multi_reduction <add>, %183, %cst_83 [1] : vector<8x32xf32> to vector<8xf32>
      %185 = vector.shape_cast %184 : vector<8xf32> to vector<8x1xf32>
      %cst_84 = arith.constant 3.200000e+01 : f32
      %186 = vector.broadcast %cst_84 : f32 to vector<8x1xf32>
      %187 = arith.divf %185, %186 : vector<8x1xf32>
      %188 = vector.broadcast %187 : vector<8x1xf32> to vector<8x32xf32>
      %189 = arith.subf %183, %188 : vector<8x32xf32>
      %190 = vector.broadcast %187 : vector<8x1xf32> to vector<8x32xf32>
      %191 = arith.subf %183, %190 : vector<8x32xf32>
      %192 = arith.mulf %189, %191 : vector<8x32xf32>
      %cst_85 = arith.constant dense<0.000000e+00> : vector<8xf32>
      %193 = vector.multi_reduction <add>, %192, %cst_85 [1] : vector<8x32xf32> to vector<8xf32>
      %194 = vector.shape_cast %193 : vector<8xf32> to vector<8x1xf32>
      %cst_86 = arith.constant 3.200000e+01 : f32
      %195 = vector.broadcast %cst_86 : f32 to vector<8x1xf32>
      %196 = arith.divf %194, %195 : vector<8x1xf32>
      %197 = vector.broadcast %187 : vector<8x1xf32> to vector<8x32xf32>
      %198 = arith.subf %183, %197 : vector<8x32xf32>
      %cst_87 = arith.constant 9.99999974E-6 : f32
      %199 = vector.broadcast %cst_87 : f32 to vector<8x1xf32>
      %200 = arith.addf %196, %199 : vector<8x1xf32>
      %201 = math.rsqrt %200 : vector<8x1xf32>
      %202 = vector.broadcast %201 : vector<8x1xf32> to vector<8x32xf32>
      %203 = arith.mulf %198, %202 : vector<8x32xf32>
      %204 = vector.broadcast %10 : vector<1x32xf32> to vector<8x32xf32>
      %205 = arith.mulf %203, %204 : vector<8x32xf32>
      %206 = vector.broadcast %11 : vector<1x32xf32> to vector<8x32xf32>
      %207 = arith.addf %205, %206 : vector<8x32xf32>
      %c0_88 = arith.constant 0 : index
      %c0_89 = arith.constant 0 : index
      %c0_90 = arith.constant 0 : index
      %208 = vector.load %arg16[%c0_88, %c0_89, %c0_90] : memref<1x8x32xf32, #tpu.memory_space<vmem>>, vector<1x8x32xf32>
      %209 = vector.shape_cast %208 : vector<1x8x32xf32> to vector<8x32xf32>
      %210 = vector.shape_cast %207 : vector<8x32xf32> to vector<1x8x32xf32>
      tpu.vector_store %arg16[%c0_88, %c0_89, %c0_90], %210 {strides = array<i32>} : memref<1x8x32xf32, #tpu.memory_space<vmem>>, vector<1x8x32xf32>,
    }
    %c0_29 = arith.constant 0 : index
    %c0_30 = arith.constant 0 : index
    %c0_31 = arith.constant 0 : index
    %18 = vector.load %arg16[%c0_29, %c0_30, %c0_31] : memref<1x8x32xf32, #tpu.memory_space<vmem>>, vector<1x8x32xf32>
    %19 = vector.shape_cast %18 : vector<1x8x32xf32> to vector<8x32xf32>
    %c0_32 = arith.constant 0 : index
    %c0_33 = arith.constant 0 : index
    %20 = vector.load %arg14[%c0_32, %c0_33] : memref<1x32xf32, #tpu.memory_space<vmem>>, vector<1x32xf32>
    %c0_34 = arith.constant 0 : index
    %c0_35 = arith.constant 0 : index
    %21 = vector.load %arg15[%c0_34, %c0_35] : memref<1x32xf32, #tpu.memory_space<vmem>>, vector<1x32xf32>
    %cst = arith.constant dense<0.000000e+00> : vector<8xf32>
    %22 = vector.multi_reduction <add>, %19, %cst [1] : vector<8x32xf32> to vector<8xf32>
    %23 = vector.shape_cast %22 : vector<8xf32> to vector<8x1xf32>
    %cst_36 = arith.constant 3.200000e+01 : f32
    %24 = vector.broadcast %cst_36 : f32 to vector<8x1xf32>
    %25 = arith.divf %23, %24 : vector<8x1xf32>
    %26 = vector.broadcast %25 : vector<8x1xf32> to vector<8x32xf32>
    %27 = arith.subf %19, %26 : vector<8x32xf32>
    %28 = vector.broadcast %25 : vector<8x1xf32> to vector<8x32xf32>
    %29 = arith.subf %19, %28 : vector<8x32xf32>
    %30 = arith.mulf %27, %29 : vector<8x32xf32>
    %cst_37 = arith.constant dense<0.000000e+00> : vector<8xf32>
    %31 = vector.multi_reduction <add>, %30, %cst_37 [1] : vector<8x32xf32> to vector<8xf32>
    %32 = vector.shape_cast %31 : vector<8xf32> to vector<8x1xf32>
    %cst_38 = arith.constant 3.200000e+01 : f32
    %33 = vector.broadcast %cst_38 : f32 to vector<8x1xf32>
    %34 = arith.divf %32, %33 : vector<8x1xf32>
    %35 = vector.broadcast %25 : vector<8x1xf32> to vector<8x32xf32>
    %36 = arith.subf %19, %35 : vector<8x32xf32>
    %cst_39 = arith.constant 9.99999974E-6 : f32
    %37 = vector.broadcast %cst_39 : f32 to vector<8x1xf32>
    %38 = arith.addf %34, %37 : vector<8x1xf32>
    %39 = math.rsqrt %38 : vector<8x1xf32>
    %40 = vector.broadcast %39 : vector<8x1xf32> to vector<8x32xf32>
    %41 = arith.mulf %36, %40 : vector<8x32xf32>
    %42 = vector.broadcast %20 : vector<1x32xf32> to vector<8x32xf32>
    %43 = arith.mulf %41, %42 : vector<8x32xf32>
    %44 = vector.broadcast %21 : vector<1x32xf32> to vector<8x32xf32>
    %45 = arith.addf %43, %44 : vector<8x32xf32>
    %c0_40 = arith.constant 0 : index
    %c0_41 = arith.constant 0 : index
    %c0_42 = arith.constant 0 : index
    %46 = vector.load %arg16[%c0_40, %c0_41, %c0_42] : memref<1x8x32xf32, #tpu.memory_space<vmem>>, vector<1x8x32xf32>
    %47 = vector.shape_cast %46 : vector<1x8x32xf32> to vector<8x32xf32>
    %48 = vector.shape_cast %45 : vector<8x32xf32> to vector<1x8x32xf32>
    tpu.vector_store %arg16[%c0_40, %c0_41, %c0_42], %48 {strides = array<i32>} : memref<1x8x32xf32, #tpu.memory_space<vmem>>, vector<1x8x32xf32>,
    return
  }
  func.func @transform_0(%arg0: i32) -> (i32, i32, i32) {
    %c0_i32 = arith.constant 0 : i32
    %c0_i32_0 = arith.constant 0 : i32
    %c0_i32_1 = arith.constant 0 : i32
    return %arg0, %c0_i32, %c0_i32_0 : i32, i32, i32
  }
  func.func @transform_1(%arg0: i32) -> (i32, i32) {
    %c0_i32 = arith.constant 0 : i32
    %c0_i32_0 = arith.constant 0 : i32
    %c0_i32_1 = arith.constant 0 : i32
    return %c0_i32, %c0_i32_0 : i32, i32
  }
  func.func @transform_2(%arg0: i32) -> (i32, i32) {
    %c0_i32 = arith.constant 0 : i32
    %c0_i32_0 = arith.constant 0 : i32
    %c0_i32_1 = arith.constant 0 : i32
    return %c0_i32, %c0_i32_0 : i32, i32
  }
  func.func @transform_3(%arg0: i32) -> (i32, i32) {
    %c0_i32 = arith.constant 0 : i32
    %c0_i32_0 = arith.constant 0 : i32
    %c0_i32_1 = arith.constant 0 : i32
    return %c0_i32, %c0_i32_0 : i32, i32
  }
  func.func @transform_4(%arg0: i32) -> (i32, i32) {
    %c0_i32 = arith.constant 0 : i32
    %c0_i32_0 = arith.constant 0 : i32
    %c0_i32_1 = arith.constant 0 : i32
    return %c0_i32, %c0_i32_0 : i32, i32
  }
  func.func @transform_5(%arg0: i32) -> (i32, i32) {
    %c0_i32 = arith.constant 0 : i32
    %c0_i32_0 = arith.constant 0 : i32
    %c0_i32_1 = arith.constant 0 : i32
    return %c0_i32, %c0_i32_0 : i32, i32
  }
  func.func @transform_6(%arg0: i32) -> (i32, i32) {
    %c0_i32 = arith.constant 0 : i32
    %c0_i32_0 = arith.constant 0 : i32
    %c0_i32_1 = arith.constant 0 : i32
    return %c0_i32, %c0_i32_0 : i32, i32
  }
  func.func @transform_7(%arg0: i32) -> (i32, i32) {
    %c0_i32 = arith.constant 0 : i32
    %c0_i32_0 = arith.constant 0 : i32
    %c0_i32_1 = arith.constant 0 : i32
    return %c0_i32, %c0_i32_0 : i32, i32
  }
  func.func @transform_8(%arg0: i32) -> (i32, i32) {
    %c0_i32 = arith.constant 0 : i32
    %c0_i32_0 = arith.constant 0 : i32
    %c0_i32_1 = arith.constant 0 : i32
    return %c0_i32, %c0_i32_0 : i32, i32
  }
  func.func @transform_9(%arg0: i32) -> (i32, i32) {
    %c0_i32 = arith.constant 0 : i32
    %c0_i32_0 = arith.constant 0 : i32
    %c0_i32_1 = arith.constant 0 : i32
    return %c0_i32, %c0_i32_0 : i32, i32
  }
  func.func @transform_10(%arg0: i32) -> (i32, i32) {
    %c0_i32 = arith.constant 0 : i32
    %c0_i32_0 = arith.constant 0 : i32
    %c0_i32_1 = arith.constant 0 : i32
    return %c0_i32, %c0_i32_0 : i32, i32
  }
  func.func @transform_11(%arg0: i32) -> (i32, i32) {
    %c0_i32 = arith.constant 0 : i32
    %c0_i32_0 = arith.constant 0 : i32
    %c0_i32_1 = arith.constant 0 : i32
    return %c0_i32, %c0_i32_0 : i32, i32
  }
  func.func @transform_12(%arg0: i32) -> (i32, i32) {
    %c0_i32 = arith.constant 0 : i32
    %c0_i32_0 = arith.constant 0 : i32
    %c0_i32_1 = arith.constant 0 : i32
    return %c0_i32, %c0_i32_0 : i32, i32
  }
  func.func @transform_13(%arg0: i32) -> (i32, i32) {
    %c0_i32 = arith.constant 0 : i32
    %c0_i32_0 = arith.constant 0 : i32
    %c0_i32_1 = arith.constant 0 : i32
    return %c0_i32, %c0_i32_0 : i32, i32
  }
  func.func @transform_14(%arg0: i32) -> (i32, i32) {
    %c0_i32 = arith.constant 0 : i32
    %c0_i32_0 = arith.constant 0 : i32
    %c0_i32_1 = arith.constant 0 : i32
    return %c0_i32, %c0_i32_0 : i32, i32
  }
  func.func @transform_15(%arg0: i32) -> (i32, i32, i32) {
    %c0_i32 = arith.constant 0 : i32
    %c0_i32_0 = arith.constant 0 : i32
    %c0_i32_1 = arith.constant 0 : i32
    return %arg0, %c0_i32, %c0_i32_0 : i32, i32, i32
  }
}

</mosaic_0001>

<llo_original>
// kernel: self_transformer_encoder.1
$region0: #{self_transformer_encoder.1}
  #allocation0 [shape = 'u32[]', space=smem, size = 0x4, offset = 0x4, fixed_abs, tag = 'smem constant byte address 0x4 - core index']
  #allocation1 [shape = 'u32[72,128]{1,0:T(1,128)}', space=vmem, size = 0x9000, scoped, tag = 'internal scratch']
  #allocation2 [shape = 'f32[8,32]{1,0:T(8,128)}', space=vmem, size = 0x1000, scoped, tag = 'scratch operand']
  %s0 = inlined_call_operand.vmem [shape: f32[2,8,32], index: 0, kind: input, shape index: {}, may-alias: {0,15}]
  %s1 = inlined_call_operand.vmem [shape: bf16[32,96], index: 1, kind: input, shape index: {}]
  %s2 = inlined_call_operand.vmem [shape: f32[1,96], index: 2, kind: input, shape index: {}]
  %s3 = inlined_call_operand.vmem [shape: bf16[32,32], index: 3, kind: input, shape index: {}]
  %s4 = inlined_call_operand.vmem [shape: f32[1,32], index: 4, kind: input, shape index: {}]
  %s5 = inlined_call_operand.vmem [shape: f32[1,32], index: 5, kind: input, shape index: {}]
  %s6 = inlined_call_operand.vmem [shape: f32[1,32], index: 6, kind: input, shape index: {}]
  %s7 = inlined_call_operand.vmem [shape: bf16[32,64], index: 7, kind: input, shape index: {}]
  %s8 = inlined_call_operand.vmem [shape: f32[1,64], index: 8, kind: input, shape index: {}]
  %s9 = inlined_call_operand.vmem [shape: bf16[64,32], index: 9, kind: input, shape index: {}]
  %s10 = inlined_call_operand.vmem [shape: f32[1,32], index: 10, kind: input, shape index: {}]
  %s11 = inlined_call_operand.vmem [shape: f32[1,32], index: 11, kind: input, shape index: {}]
  %s12 = inlined_call_operand.vmem [shape: f32[1,32], index: 12, kind: input, shape index: {}]
  %s13 = inlined_call_operand.vmem [shape: f32[1,32], index: 13, kind: input, shape index: {}]
  %s14 = inlined_call_operand.vmem [shape: f32[1,32], index: 14, kind: input, shape index: {}]
  %s15 = inlined_call_operand.vmem [shape: f32[2,8,32], index: 15, kind: output, shape index: {}, may-alias: {0,15}]
  %s16 = sld [smem:[#allocation0]]
  $region100: #{self_transformer_encoder.1} parent=0
    _
  %s18 = ssub.s32 1, %s16
  %s19 = scalar_select 0, %s18, %s16
  loop: start=0, step=1, limit=4
  $region2: #{self_transformer_encoder.1} parent=0 // loop_pre_header
    _
  $region3: #{self_transformer_encoder.1} parent=0 // loop_header
    %s21 = sphi 0, %s25
    %p22 = scmp.ge.s32.totalorder %s21, 4
    %s31 = sphi 0, %s33
    %s34 = sphi 0, %s31
    %s35 = sphi 0, %s34
    %s51 = sphi 0, %s35
    %s55 = sphi 0, %s55
    %s57 = sphi 0, %s55
    %s58 = sphi 0, %s57
    %s72 = sphi 0, %s58
    %s76 = sphi 0, %s76
    %s78 = sphi 0, %s76
    %s79 = sphi 0, %s78
    %s93 = sphi 0, %s79
    %s97 = sphi 0, %s97
    %s99 = sphi 0, %s97
    %s100 = sphi 0, %s99
    %s114 = sphi 0, %s100
    %s118 = sphi 0, %s118
    %s120 = sphi 0, %s118
    %s121 = sphi 0, %s120
    %s135 = sphi 0, %s121
    %s139 = sphi 0, %s139
    %s141 = sphi 0, %s139
    %s142 = sphi 0, %s141
    %s156 = sphi 0, %s142
    %s160 = sphi 0, %s160
    %s162 = sphi 0, %s160
    %s163 = sphi 0, %s162
    %s177 = sphi 0, %s163
    %s181 = sphi 0, %s181
    %s183 = sphi 0, %s181
    %s184 = sphi 0, %s183
    %s198 = sphi 0, %s184
    %s202 = sphi 0, %s202
    %s204 = sphi 0, %s202
    %s205 = sphi 0, %s204
    %s219 = sphi 0, %s205
    %s223 = sphi 0, %s223
    %s225 = sphi 0, %s223
    %s226 = sphi 0, %s225
    %s240 = sphi 0, %s226
    %s244 = sphi 0, %s244
    %s246 = sphi 0, %s244
    %s247 = sphi 0, %s246
    %s261 = sphi 0, %s247
    %s265 = sphi 0, %s265
    %s267 = sphi 0, %s265
    %s268 = sphi 0, %s267
    %s282 = sphi 0, %s268
    %s286 = sphi 0, %s286
    %s288 = sphi 0, %s286
    %s289 = sphi 0, %s288
    %s303 = sphi 0, %s289
    %s307 = sphi 0, %s307
    %s309 = sphi 0, %s307
    %s310 = sphi 0, %s309
    %s324 = sphi 0, %s310
    %s328 = sphi 0, %s328
    %s330 = sphi 0, %s328
    %s331 = sphi 0, %s330
    %s345 = sphi 0, %s331
    %s351 = sphi 0, %s353
    %s354 = sphi 0, %s351
    %s355 = sphi 0, %s354
    %s371 = sphi 0, %s355
  $region4: #{self_transformer_encoder.1} parent=0 // loop_header_branch
    %24 = sbr.rel (%p22) target = $region8
  $region5: #{self_transformer_encoder.1} parent=0 // loop_body
    %s26 = ssub.s32 %s21, 1
    %s27 = ssub.s32 %s21, 2
    %s28 = sadd.s32 %s21, 1
    %s29 = ssub.s32 %s21, %s28
    %p30 = scmp.eq.s32.totalorder %s29, 0
    %s32 = sadd.s32 %s31, 1
    %s33 = scalar_select %p30, %s31, %s32
    %p36 = pneg %p30
    %p37 = scmp.eq.s32.totalorder %s21, 1
    %p38 = por %p36, %p37
    %p39 = scmp.ne.s32.totalorder %s31, %s34
    %p40 = scmp.eq.s32.totalorder %s21, 0
    %p41 = por %p39, %p40
    %p42 = scmp.ne.s32.totalorder %s31, %s34
    %p43 = scmp.eq.s32.totalorder %s26, 1
    %p44 = por %p42, %p43
    %p45 = scmp.ne.s32.totalorder %s34, %s35
    %p46 = scmp.eq.s32.totalorder %s26, 0
    %p47 = por %p45, %p46
    %p48 = scmp.ne.s32.totalorder %s34, %s35
    %p49 = scmp.eq.s32.totalorder %s27, 1
    %p50 = por %p48, %p49
    %p52 = scmp.ne.s32.totalorder %s35, %s51
    %p53 = scmp.eq.s32.totalorder %s27, 0
    %p54 = por %p52, %p53
    %s56 = sadd.s32 %s55, 1
    %p59 = scmp.eq.s32.totalorder %s21, 1
    %p60 = scmp.ne.s32.totalorder %s55, %s57
    %p61 = scmp.eq.s32.totalorder %s21, 0
    %p62 = por %p60, %p61
    %p63 = scmp.ne.s32.totalorder %s55, %s57
    %p64 = scmp.eq.s32.totalorder %s26, 1
    %p65 = por %p63, %p64
    %p66 = scmp.ne.s32.totalorder %s57, %s58
    %p67 = scmp.eq.s32.totalorder %s26, 0
    %p68 = por %p66, %p67
    %p69 = scmp.ne.s32.totalorder %s57, %s58
    %p70 = scmp.eq.s32.totalorder %s27, 1
    %p71 = por %p69, %p70
    %p73 = scmp.ne.s32.totalorder %s58, %s72
    %p74 = scmp.eq.s32.totalorder %s27, 0
    %p75 = por %p73, %p74
    %s77 = sadd.s32 %s76, 1
    %p80 = scmp.eq.s32.totalorder %s21, 1
    %p81 = scmp.ne.s32.totalorder %s76, %s78
    %p82 = scmp.eq.s32.totalorder %s21, 0
    %p83 = por %p81, %p82
    %p84 = scmp.ne.s32.totalorder %s76, %s78
    %p85 = scmp.eq.s32.totalorder %s26, 1
    %p86 = por %p84, %p85
    %p87 = scmp.ne.s32.totalorder %s78, %s79
    %p88 = scmp.eq.s32.totalorder %s26, 0
    %p89 = por %p87, %p88
    %p90 = scmp.ne.s32.totalorder %s78, %s79
    %p91 = scmp.eq.s32.totalorder %s27, 1
    %p92 = por %p90, %p91
    %p94 = scmp.ne.s32.totalorder %s79, %s93
    %p95 = scmp.eq.s32.totalorder %s27, 0
    %p96 = por %p94, %p95
    %s98 = sadd.s32 %s97, 1
    %p101 = scmp.eq.s32.totalorder %s21, 1
    %p102 = scmp.ne.s32.totalorder %s97, %s99
    %p103 = scmp.eq.s32.totalorder %s21, 0
    %p104 = por %p102, %p103
    %p105 = scmp.ne.s32.totalorder %s97, %s99
    %p106 = scmp.eq.s32.totalorder %s26, 1
    %p107 = por %p105, %p106
    %p108 = scmp.ne.s32.totalorder %s99, %s100
    %p109 = scmp.eq.s32.totalorder %s26, 0
    %p110 = por %p108, %p109
    %p111 = scmp.ne.s32.totalorder %s99, %s100
    %p112 = scmp.eq.s32.totalorder %s27, 1
    %p113 = por %p111, %p112
    %p115 = scmp.ne.s32.totalorder %s100, %s114
    %p116 = scmp.eq.s32.totalorder %s27, 0
    %p117 = por %p115, %p116
    %s119 = sadd.s32 %s118, 1
    %p122 = scmp.eq.s32.totalorder %s21, 1
    %p123 = scmp.ne.s32.totalorder %s118, %s120
    %p124 = scmp.eq.s32.totalorder %s21, 0
    %p125 = por %p123, %p124
    %p126 = scmp.ne.s32.totalorder %s118, %s120
    %p127 = scmp.eq.s32.totalorder %s26, 1
    %p128 = por %p126, %p127
    %p129 = scmp.ne.s32.totalorder %s120, %s121
    %p130 = scmp.eq.s32.totalorder %s26, 0
    %p131 = por %p129, %p130
    %p132 = scmp.ne.s32.totalorder %s120, %s121
    %p133 = scmp.eq.s32.totalorder %s27, 1
    %p134 = por %p132, %p133
    %p136 = scmp.ne.s32.totalorder %s121, %s135
    %p137 = scmp.eq.s32.totalorder %s27, 0
    %p138 = por %p136, %p137
    %s140 = sadd.s32 %s139, 1
    %p143 = scmp.eq.s32.totalorder %s21, 1
    %p144 = scmp.ne.s32.totalorder %s139, %s141
    %p145 = scmp.eq.s32.totalorder %s21, 0
    %p146 = por %p144, %p145
    %p147 = scmp.ne.s32.totalorder %s139, %s141
    %p148 = scmp.eq.s32.totalorder %s26, 1
    %p149 = por %p147, %p148
    %p150 = scmp.ne.s32.totalorder %s141, %s142
    %p151 = scmp.eq.s32.totalorder %s26, 0
    %p152 = por %p150, %p151
    %p153 = scmp.ne.s32.totalorder %s141, %s142
    %p154 = scmp.eq.s32.totalorder %s27, 1
    %p155 = por %p153, %p154
    %p157 = scmp.ne.s32.totalorder %s142, %s156
    %p158 = scmp.eq.s32.totalorder %s27, 0
    %p159 = por %p157, %p158
    %s161 = sadd.s32 %s160, 1
    %p164 = scmp.eq.s32.totalorder %s21, 1
    %p165 = scmp.ne.s32.totalorder %s160, %s162
    %p166 = scmp.eq.s32.totalorder %s21, 0
    %p167 = por %p165, %p166
    %p168 = scmp.ne.s32.totalorder %s160, %s162
    %p169 = scmp.eq.s32.totalorder %s26, 1
    %p170 = por %p168, %p169
    %p171 = scmp.ne.s32.totalorder %s162, %s163
    %p172 = scmp.eq.s32.totalorder %s26, 0
    %p173 = por %p171, %p172
    %p174 = scmp.ne.s32.totalorder %s162, %s163
    %p175 = scmp.eq.s32.totalorder %s27, 1
    %p176 = por %p174, %p175
    %p178 = scmp.ne.s32.totalorder %s163, %s177
    %p179 = scmp.eq.s32.totalorder %s27, 0
    %p180 = por %p178, %p179
    %s182 = sadd.s32 %s181, 1
    %p185 = scmp.eq.s32.totalorder %s21, 1
    %p186 = scmp.ne.s32.totalorder %s181, %s183
    %p187 = scmp.eq.s32.totalorder %s21, 0
    %p188 = por %p186, %p187
    %p189 = scmp.ne.s32.totalorder %s181, %s183
    %p190 = scmp.eq.s32.totalorder %s26, 1
    %p191 = por %p189, %p190
    %p192 = scmp.ne.s32.totalorder %s183, %s184
    %p193 = scmp.eq.s32.totalorder %s26, 0
    %p194 = por %p192, %p193
    %p195 = scmp.ne.s32.totalorder %s183, %s184
    %p196 = scmp.eq.s32.totalorder %s27, 1
    %p197 = por %p195, %p196
    %p199 = scmp.ne.s32.totalorder %s184, %s198
    %p200 = scmp.eq.s32.totalorder %s27, 0
    %p201 = por %p199, %p200
    %s203 = sadd.s32 %s202, 1
    %p206 = scmp.eq.s32.totalorder %s21, 1
    %p207 = scmp.ne.s32.totalorder %s202, %s204
    %p208 = scmp.eq.s32.totalorder %s21, 0
    %p209 = por %p207, %p208
    %p210 = scmp.ne.s32.totalorder %s202, %s204
    %p211 = scmp.eq.s32.totalorder %s26, 1
    %p212 = por %p210, %p211
    %p213 = scmp.ne.s32.totalorder %s204, %s205
    %p214 = scmp.eq.s32.totalorder %s26, 0
    %p215 = por %p213, %p214
    %p216 = scmp.ne.s32.totalorder %s204, %s205
    %p217 = scmp.eq.s32.totalorder %s27, 1
    %p218 = por %p216, %p217
    %p220 = scmp.ne.s32.totalorder %s205, %s219
    %p221 = scmp.eq.s32.totalorder %s27, 0
    %p222 = por %p220, %p221
    %s224 = sadd.s32 %s223, 1
    %p227 = scmp.eq.s32.totalorder %s21, 1
    %p228 = scmp.ne.s32.totalorder %s223, %s225
    %p229 = scmp.eq.s32.totalorder %s21, 0
    %p230 = por %p228, %p229
    %p231 = scmp.ne.s32.totalorder %s223, %s225
    %p232 = scmp.eq.s32.totalorder %s26, 1
    %p233 = por %p231, %p232
    %p234 = scmp.ne.s32.totalorder %s225, %s226
    %p235 = scmp.eq.s32.totalorder %s26, 0
    %p236 = por %p234, %p235
    %p237 = scmp.ne.s32.totalorder %s225, %s226
    %p238 = scmp.eq.s32.totalorder %s27, 1
    %p239 = por %p237, %p238
    %p241 = scmp.ne.s32.totalorder %s226, %s240
    %p242 = scmp.eq.s32.totalorder %s27, 0
    %p243 = por %p241, %p242
    %s245 = sadd.s32 %s244, 1
    %p248 = scmp.eq.s32.totalorder %s21, 1
    %p249 = scmp.ne.s32.totalorder %s244, %s246
    %p250 = scmp.eq.s32.totalorder %s21, 0
    %p251 = por %p249, %p250
    %p252 = scmp.ne.s32.totalorder %s244, %s246
    %p253 = scmp.eq.s32.totalorder %s26, 1
    %p254 = por %p252, %p253
    %p255 = scmp.ne.s32.totalorder %s246, %s247
    %p256 = scmp.eq.s32.totalorder %s26, 0
    %p257 = por %p255, %p256
    %p258 = scmp.ne.s32.totalorder %s246, %s247
    %p259 = scmp.eq.s32.totalorder %s27, 1
    %p260 = por %p258, %p259
    %p262 = scmp.ne.s32.totalorder %s247, %s261
    %p263 = scmp.eq.s32.totalorder %s27, 0
    %p264 = por %p262, %p263
    %s266 = sadd.s32 %s265, 1
    %p269 = scmp.eq.s32.totalorder %s21, 1
    %p270 = scmp.ne.s32.totalorder %s265, %s267
    %p271 = scmp.eq.s32.totalorder %s21, 0
    %p272 = por %p270, %p271
    %p273 = scmp.ne.s32.totalorder %s265, %s267
    %p274 = scmp.eq.s32.totalorder %s26, 1
    %p275 = por %p273, %p274
    %p276 = scmp.ne.s32.totalorder %s267, %s268
    %p277 = scmp.eq.s32.totalorder %s26, 0
    %p278 = por %p276, %p277
    %p279 = scmp.ne.s32.totalorder %s267, %s268
    %p280 = scmp.eq.s32.totalorder %s27, 1
    %p281 = por %p279, %p280
    %p283 = scmp.ne.s32.totalorder %s268, %s282
    %p284 = scmp.eq.s32.totalorder %s27, 0
    %p285 = por %p283, %p284
    %s287 = sadd.s32 %s286, 1
    %p290 = scmp.eq.s32.totalorder %s21, 1
    %p291 = scmp.ne.s32.totalorder %s286, %s288
    %p292 = scmp.eq.s32.totalorder %s21, 0
    %p293 = por %p291, %p292
    %p294 = scmp.ne.s32.totalorder %s286, %s288
    %p295 = scmp.eq.s32.totalorder %s26, 1
    %p296 = por %p294, %p295
    %p297 = scmp.ne.s32.totalorder %s288, %s289
    %p298 = scmp.eq.s32.totalorder %s26, 0
    %p299 = por %p297, %p298
    %p300 = scmp.ne.s32.totalorder %s288, %s289
    %p301 = scmp.eq.s32.totalorder %s27, 1
    %p302 = por %p300, %p301
    %p304 = scmp.ne.s32.totalorder %s289, %s303
    %p305 = scmp.eq.s32.totalorder %s27, 0
    %p306 = por %p304, %p305
    %s308 = sadd.s32 %s307, 1
    %p311 = scmp.eq.s32.totalorder %s21, 1
    %p312 = scmp.ne.s32.totalorder %s307, %s309
    %p313 = scmp.eq.s32.totalorder %s21, 0
    %p314 = por %p312, %p313
    %p315 = scmp.ne.s32.totalorder %s307, %s309
    %p316 = scmp.eq.s32.totalorder %s26, 1
    %p317 = por %p315, %p316
    %p318 = scmp.ne.s32.totalorder %s309, %s310
    %p319 = scmp.eq.s32.totalorder %s26, 0
    %p320 = por %p318, %p319
    %p321 = scmp.ne.s32.totalorder %s309, %s310
    %p322 = scmp.eq.s32.totalorder %s27, 1
    %p323 = por %p321, %p322
    %p325 = scmp.ne.s32.totalorder %s310, %s324
    %p326 = scmp.eq.s32.totalorder %s27, 0
    %p327 = por %p325, %p326
    %s329 = sadd.s32 %s328, 1
    %p332 = scmp.eq.s32.totalorder %s21, 1
    %p333 = scmp.ne.s32.totalorder %s328, %s330
    %p334 = scmp.eq.s32.totalorder %s21, 0
    %p335 = por %p333, %p334
    %p336 = scmp.ne.s32.totalorder %s328, %s330
    %p337 = scmp.eq.s32.totalorder %s26, 1
    %p338 = por %p336, %p337
    %p339 = scmp.ne.s32.totalorder %s330, %s331
    %p340 = scmp.eq.s32.totalorder %s26, 0
    %p341 = por %p339, %p340
    %p342 = scmp.ne.s32.totalorder %s330, %s331
    %p343 = scmp.eq.s32.totalorder %s27, 1
    %p344 = por %p342, %p343
    %p346 = scmp.ne.s32.totalorder %s331, %s345
    %p347 = scmp.eq.s32.totalorder %s27, 0
    %p348 = por %p346, %p347
    %s349 = ssub.s32 %s21, %s28
    %p350 = scmp.eq.s32.totalorder %s349, 0
    %s352 = sadd.s32 %s351, 1
    %s353 = scalar_select %p350, %s351, %s352
    %p356 = pneg %p350
    %p357 = scmp.eq.s32.totalorder %s21, 1
    %p358 = por %p356, %p357
    %p359 = scmp.ne.s32.totalorder %s351, %s354
    %p360 = scmp.eq.s32.totalorder %s21, 0
    %p361 = por %p359, %p360
    %p362 = scmp.ne.s32.totalorder %s351, %s354
    %p363 = scmp.eq.s32.totalorder %s26, 1
    %p364 = por %p362, %p363
    %p365 = scmp.ne.s32.totalorder %s354, %s355
    %p366 = scmp.eq.s32.totalorder %s26, 0
    %p367 = por %p365, %p366
    %p368 = scmp.ne.s32.totalorder %s354, %s355
    %p369 = scmp.eq.s32.totalorder %s27, 1
    %p370 = por %p368, %p369
    %p372 = scmp.ne.s32.totalorder %s355, %s371
    %p373 = scmp.eq.s32.totalorder %s27, 0
    %p374 = por %p372, %p373
    %p375 = scmp.le.s32.totalorder 1, %s21
    %p376 = scmp.lt.s32.totalorder %s21, 3
    %p377 = pnand %p375, %p376
    %p378 = pneg %p377
    // Predicated region
    $region9: #{self_transformer_encoder.1} parent=5 // pred_check
      _
    $region10: #{self_transformer_encoder.1} parent=5 // pred_check_branch
      %380 = sbr.rel (%p377) target = $region12
    $region11: #{self_transformer_encoder.1} parent=5 // pred_region
      %s381 = ssub.s32 %s21, 1
      // Predicated region
      $region13: #{self_transformer_encoder.1} parent=11 // pred_check
        %p382 = pneg %p68
      $region14: #{self_transformer_encoder.1} parent=11 // pred_check_branch
        %384 = sbr.rel (%p382) target = $region16
      $region15: #{self_transformer_encoder.1} parent=11 // pred_region
        _
      $region16: #{self_transformer_encoder.1} parent=11 // pred_fallthru
        _
      // Predicated region
      $region17: #{self_transformer_encoder.1} parent=11 // pred_check
        %p385 = pneg %p89
      $region18: #{self_transformer_encoder.1} parent=11 // pred_check_branch
        %387 = sbr.rel (%p385) target = $region20
      $region19: #{self_transformer_encoder.1} parent=11 // pred_region
        _
      $region20: #{self_transformer_encoder.1} parent=11 // pred_fallthru
        _
      // Predicated region
      $region21: #{self_transformer_encoder.1} parent=11 // pred_check
        %p388 = pneg %p110
      $region22: #{self_transformer_encoder.1} parent=11 // pred_check_branch
        %390 = sbr.rel (%p388) target = $region24
      $region23: #{self_transformer_encoder.1} parent=11 // pred_region
        _
      $region24: #{self_transformer_encoder.1} parent=11 // pred_fallthru
        _
      // Predicated region
      $region25: #{self_transformer_encoder.1} parent=11 // pred_check
        %p391 = pneg %p131
      $region26: #{self_transformer_encoder.1} parent=11 // pred_check_branch
        %393 = sbr.rel (%p391) target = $region28
      $region27: #{self_transformer_encoder.1} parent=11 // pred_region
        _
      $region28: #{self_transformer_encoder.1} parent=11 // pred_fallthru
        _
      // Predicated region
      $region29: #{self_transformer_encoder.1} parent=11 // pred_check
        %p394 = pneg %p152
      $region30: #{self_transformer_encoder.1} parent=11 // pred_check_branch
        %396 = sbr.rel (%p394) target = $region32
      $region31: #{self_transformer_encoder.1} parent=11 // pred_region
        _
      $region32: #{self_transformer_encoder.1} parent=11 // pred_fallthru
        _
      // Predicated region
      $region33: #{self_transformer_encoder.1} parent=11 // pred_check
        %p397 = pneg %p173
      $region34: #{self_transformer_encoder.1} parent=11 // pred_check_branch
        %399 = sbr.rel (%p397) target = $region36
      $region35: #{self_transformer_encoder.1} parent=11 // pred_region
        _
      $region36: #{self_transformer_encoder.1} parent=11 // pred_fallthru
        _
      // Predicated region
      $region37: #{self_transformer_encoder.1} parent=11 // pred_check
        %p400 = pneg %p194
      $region38: #{self_transformer_encoder.1} parent=11 // pred_check_branch
        %402 = sbr.rel (%p400) target = $region40
      $region39: #{self_transformer_encoder.1} parent=11 // pred_region
        _
      $region40: #{self_transformer_encoder.1} parent=11 // pred_fallthru
        _
      // Predicated region
      $region41: #{self_transformer_encoder.1} parent=11 // pred_check
        %p403 = pneg %p215
      $region42: #{self_transformer_encoder.1} parent=11 // pred_check_branch
        %405 = sbr.rel (%p403) target = $region44
      $region43: #{self_transformer_encoder.1} parent=11 // pred_region
        _
      $region44: #{self_transformer_encoder.1} parent=11 // pred_fallthru
        _
      // Predicated region
      $region45: #{self_transformer_encoder.1} parent=11 // pred_check
        %p406 = pneg %p236
      $region46: #{self_transformer_encoder.1} parent=11 // pred_check_branch
        %408 = sbr.rel (%p406) target = $region48
      $region47: #{self_transformer_encoder.1} parent=11 // pred_region
        _
      $region48: #{self_transformer_encoder.1} parent=11 // pred_fallthru
        _
      // Predicated region
      $region49: #{self_transformer_encoder.1} parent=11 // pred_check
        %p409 = pneg %p257
      $region50: #{self_transformer_encoder.1} parent=11 // pred_check_branch
        %411 = sbr.rel (%p409) target = $region52
      $region51: #{self_transformer_encoder.1} parent=11 // pred_region
        _
      $region52: #{self_transformer_encoder.1} parent=11 // pred_fallthru
        _
      // Predicated region
      $region53: #{self_transformer_encoder.1} parent=11 // pred_check
        %p412 = pneg %p278
      $region54: #{self_transformer_encoder.1} parent=11 // pred_check_branch
        %414 = sbr.rel (%p412) target = $region56
      $region55: #{self_transformer_encoder.1} parent=11 // pred_region
        _
      $region56: #{self_transformer_encoder.1} parent=11 // pred_fallthru
        _
      // Predicated region
      $region57: #{self_transformer_encoder.1} parent=11 // pred_check
        %p415 = pneg %p299
      $region58: #{self_transformer_encoder.1} parent=11 // pred_check_branch
        %417 = sbr.rel (%p415) target = $region60
      $region59: #{self_transformer_encoder.1} parent=11 // pred_region
        _
      $region60: #{self_transformer_encoder.1} parent=11 // pred_fallthru
        _
      // Predicated region
      $region61: #{self_transformer_encoder.1} parent=11 // pred_check
        %p418 = pneg %p320
      $region62: #{self_transformer_encoder.1} parent=11 // pred_check_branch
        %420 = sbr.rel (%p418) target = $region64
      $region63: #{self_transformer_encoder.1} parent=11 // pred_region
        _
      $region64: #{self_transformer_encoder.1} parent=11 // pred_fallthru
        _
      // Predicated region
      $region65: #{self_transformer_encoder.1} parent=11 // pred_check
        %p421 = pneg %p341
      $region66: #{self_transformer_encoder.1} parent=11 // pred_check_branch
        %423 = sbr.rel (%p421) target = $region68
      $region67: #{self_transformer_encoder.1} parent=11 // pred_region
        _
      $region68: #{self_transformer_encoder.1} parent=11 // pred_fallthru
        _
    $region12: #{self_transformer_encoder.1} parent=5 // pred_fallthru
      _
    %p424 = scmp.lt.s32.totalorder %s21, 2
    // Predicated region
    $region69: #{self_transformer_encoder.1} parent=5 // pred_check
      %p425 = pneg %p424
    $region70: #{self_transformer_encoder.1} parent=5 // pred_check_branch
      %427 = sbr.rel (%p425) target = $region72
    $region71: #{self_transformer_encoder.1} parent=5 // pred_region
      // Predicated region
      $region73: #{self_transformer_encoder.1} parent=71 // pred_check
        %p428 = pneg %p41
      $region74: #{self_transformer_encoder.1} parent=71 // pred_check_branch
        %430 = sbr.rel (%p428) target = $region76
      $region75: #{self_transformer_encoder.1} parent=71 // pred_region
        %p431 = scmp.lt.s32.totalorder %s21, 1
        %s432 = scalar_select %p431, %s21, 1
        %s433 = smul.addr %s432, 8
        %s434 = scalar_lea.vmem %s0, %s433
      $region76: #{self_transformer_encoder.1} parent=71 // pred_fallthru
        _
    $region72: #{self_transformer_encoder.1} parent=5 // pred_fallthru
      _
    %p435 = scmp.le.s32.totalorder 1, %s21
    %p436 = scmp.lt.s32.totalorder %s21, 3
    %p437 = pnand %p435, %p436
    %p438 = pneg %p437
    // Predicated region
    $region77: #{self_transformer_encoder.1} parent=5 // pred_check
      _
    $region78: #{self_transformer_encoder.1} parent=5 // pred_check_branch
      %440 = sbr.rel (%p437) target = $region80
    $region79: #{self_transformer_encoder.1} parent=5 // pred_region
      %s441 = ssub.s32 %s21, 1
      %p442 = scmp.lt.s32.totalorder %s26, 1
      %s443 = scalar_select %p442, %s26, 1
      %s444 = smul.addr %s443, 8
      %s445 = scalar_lea.vmem %s0, %s444
      %p446 = pneg %p47
      %p447 = pneg %p44
      %p448 = pneg %p68
      %p449 = pneg %p65
      %p450 = pneg %p89
      %p451 = pneg %p86
      %p452 = pneg %p110
      %p453 = pneg %p107
      %p454 = pneg %p131
      %p455 = pneg %p128
      %p456 = pneg %p152
      %p457 = pneg %p149
      %p458 = pneg %p173
      %p459 = pneg %p170
      %p460 = pneg %p194
      %p461 = pneg %p191
      %p462 = pneg %p215
      %p463 = pneg %p212
      %p464 = pneg %p236
      %p465 = pneg %p233
      %p466 = pneg %p257
      %p467 = pneg %p254
      %p468 = pneg %p278
      %p469 = pneg %p275
      %p470 = pneg %p299
      %p471 = pneg %p296
      %p472 = pneg %p320
      %p473 = pneg %p317
      %p474 = pneg %p341
      %p475 = pneg %p338
      %p476 = pneg %p367
      %p477 = pneg %p364
      %p478 = scmp.lt.s32.totalorder %s26, 1
      %s479 = scalar_select %p478, %s26, 1
      %s480 = smul.addr %s479, 8
      %s481 = scalar_lea.vmem %s15, %s480
      %p482 = scmp.lt.s32.totalorder %s26, 1
      %s483 = scalar_select %p482, %s26, 1
      %s484 = smul.addr %s483, 8
      %s485 = scalar_lea.vmem %s0, %s484
      %p486 = scmp.lt.s32.totalorder %s26, 1
      %s487 = scalar_select %p486, %s26, 1
      %s488 = smul.addr %s487, 8
      %s489 = scalar_lea.vmem %s15, %s488
      %v491 = vld [vmem:[%s1] sm:$0xf]
      %v492 = vld [vmem:[%s1 + $0x4] sm:$0xf]
      %v493 = vld [vmem:[%s1 + $0x8] sm:$0xf]
      %v494 = vld [vmem:[%s1 + $0xc] sm:$0xf]
      %v495 = vld [vmem:[%s2] sm:$0x1]
      %v496 = vld [vmem:[%s3] sm:$0xf]
      %v497 = vld [vmem:[%s3 + $0x4] sm:$0xf]
      %v498 = vld [vmem:[%s3 + $0x8] sm:$0xf]
      %v499 = vld [vmem:[%s3 + $0xc] sm:$0xf]
      %v500 = vld [vmem:[%s4] sm:$0x1]
      %v501 = vld [vmem:[%s5] sm:$0x1]
      %v502 = vld [vmem:[%s6] sm:$0x1]
      %v503 = vld [vmem:[%s7] sm:$0xf]
      %v504 = vld [vmem:[%s7 + $0x4] sm:$0xf]
      %v505 = vld [vmem:[%s7 + $0x8] sm:$0xf]
      %v506 = vld [vmem:[%s7 + $0xc] sm:$0xf]
      %v507 = vld [vmem:[%s8] sm:$0x1]
      %v508 = vld [vmem:[%s9] sm:$0xf]
      %v509 = vld [vmem:[%s9 + $0x4] sm:$0xf]
      %v510 = vld [vmem:[%s9 + $0x8] sm:$0xf]
      %v511 = vld [vmem:[%s9 + $0xc] sm:$0xf]
      %v512 = vld [vmem:[%s9 + $0x10] sm:$0xf]
      %v513 = vld [vmem:[%s9 + $0x14] sm:$0xf]
      %v514 = vld [vmem:[%s9 + $0x18] sm:$0xf]
      %v515 = vld [vmem:[%s9 + $0x1c] sm:$0xf]
      %v516 = vld [vmem:[%s10] sm:$0x1]
      %v517 = vld [vmem:[%s11] sm:$0x1]
      %v518 = vld [vmem:[%s12] sm:$0x1]
      %v519 = vld [vmem:[%s485] sm:$0xff]
      %vm520 = vcmask 261120
      %521 = vst.msk [vmem:[%s489] sm:$0xff] %vm520, %v519
      loop: start=0, step=1, limit=2
      $region81: #{self_transformer_encoder.1} parent=79 // loop_pre_header
        _
      $region82: #{self_transformer_encoder.1} parent=79 // loop_header
        %s523 = sphi 0, %s527
        %p524 = scmp.ge.s32.totalorder %s523, 2
      $region83: #{self_transformer_encoder.1} parent=79 // loop_header_branch
        %526 = sbr.rel (%p524) target = $region87
      $region84: #{self_transformer_encoder.1} parent=79 // loop_body
        %v528 = vld [vmem:[%s489] sm:$0xff]
        %v529 = vpack.c.bf16 %v528, %v528
        %v531 = vperm.slane %v495, 0
        %v537 = vunpack.c.l.b16 %v491
        %v538 = vunpack.c.l.b16 %v492
        %v539 = vunpack.c.l.b16 %v493
        %v540 = vunpack.c.l.b16 %v494
        %v541 = vpack.c.b16 %v538, %v537
        %v542 = vpack.c.b16 %v540, %v539
        %v546 = vsel %vm520, %v529, 0
        %548 = vmatpush.bf16.msra.mxu0 0
        %549 = vmatpush.bf16.msra.mxu0 0
        %550 = vmatpush.bf16.msra.mxu0 0
        %551 = vmatpush.bf16.msra.mxu0 0
        %552 = vmatpush.bf16.msra.mxu0 0
        %553 = vmatpush.bf16.msra.mxu0 0
        %554 = vmatpush.bf16.msra.mxu0 %v542
        %555 = vmatpush.bf16.msra.mxu0 %v541
        %556 = vmatmul.bf16.gmra.mxu0 %v546
        %v557 = vpop.f32.mrf.mxu0
        %v558 = vadd.f32 %v531, %v557
        %v559 = vpop.f32.mrf.mxu0
        %560 = vdwg.mxu0
        %v561 = vpack.c.bf16 %v558, %v558
        %563 = vrot.lane.b32.xlu0 %v561, 96
        %v564 = vpop.permute.xlu0 %563
        %vm565 = vcmask 64512
        %v567 = vsel %vm565, %v561, 0
        %v570 = vsel %vm565, %v564, 0
        %572 = vmatpush.bf16.xpose.msra.mxu0 0
        %573 = vmatpush.bf16.xpose.msra.mxu0 0
        %574 = vmatpush.bf16.xpose.msra.mxu0 0
        %575 = vmatpush.bf16.xpose.msra.mxu0 0
        %576 = vmatpush.bf16.xpose.msra.mxu0 0
        %577 = vmatpush.bf16.xpose.msra.mxu0 0
        %578 = vmatpush.bf16.xpose.msra.mxu0 0
        %579 = vmatpush.bf16.xpose.msra.mxu0 %v570
        %580 = vmatmul.bf16.gmra.mxu0 %v567
        %v581 = vpop.f32.mrf.mxu0
        %v582 = vadd.f32 0.0, %v581
        %v583 = vpop.f32.mrf.mxu0
        %584 = vdwg.mxu0
        %v585 = vmul.f32 %v582, 0.35355338
        %v586 = vsel %vm565, %v585, -inf
        %587 = vmax.xlane.f32.xlu0 %v586
        %v588 = vpop.xlane.xlu0 %587
        %v589 = vsub.f32 %v585, %v588
        %v590 = vmul.f32 %v589, 1.442695
        %v591 = vpow.pop %v590
        %v592 = vsel %vm565, %v591, 0.0
        %593 = vadd.xlane.f32.xlu0 %v592
        %v594 = vpop.xlane.xlu0 %593
        %v595 = vrcp.pop %v594
        %v596 = vmul.f32 %v591, %v595
        %v597 = vpack.c.bf16 %v596, %v596
        %598 = vrot.lane.b32.xlu0 %v561, 64
        %v599 = vpop.permute.xlu0 %598
        %v601 = vsel %vm565, %v597, 0
        %vm603 = vcmask 1043456
        %v605 = vsel %vm603, %v599, 0
        %607 = vmatpush.bf16.msra.mxu0 0
        %608 = vmatpush.bf16.msra.mxu0 0
        %609 = vmatpush.bf16.msra.mxu0 0
        %610 = vmatpush.bf16.msra.mxu0 0
        %611 = vmatpush.bf16.msra.mxu0 0
        %612 = vmatpush.bf16.msra.mxu0 0
        %613 = vmatpush.bf16.msra.mxu0 0
        %614 = vmatpush.bf16.msra.mxu0 %v605
        %615 = vmatmul.bf16.gmra.mxu0 %v601
        %v616 = vpop.f32.mrf.mxu0
        %v617 = vadd.f32 0.0, %v616
        %v618 = vpop.f32.mrf.mxu0
        %619 = vdwg.mxu0
        %620 = vst.msk [vmem:[#allocation2] sm:$0xff] %vm565, %v617
        %621 = vrot.lane.b32.xlu0 %v561, 120
        %v622 = vpop.permute.xlu0 %621
        %623 = vrot.lane.b32.xlu0 %v561, 88
        %v624 = vpop.permute.xlu0 %623
        %v626 = vsel %vm565, %v622, 0
        %v629 = vsel %vm565, %v624, 0
        %631 = vmatpush.bf16.xpose.msra.mxu0 0
        %632 = vmatpush.bf16.xpose.msra.mxu0 0
        %633 = vmatpush.bf16.xpose.msra.mxu0 0
        %634 = vmatpush.bf16.xpose.msra.mxu0 0
        %635 = vmatpush.bf16.xpose.msra.mxu0 0
        %636 = vmatpush.bf16.xpose.msra.mxu0 0
        %637 = vmatpush.bf16.xpose.msra.mxu0 0
        %638 = vmatpush.bf16.xpose.msra.mxu0 %v629
        %639 = vmatmul.bf16.gmra.mxu0 %v626
        %v640 = vpop.f32.mrf.mxu0
        %v641 = vadd.f32 0.0, %v640
        %v642 = vpop.f32.mrf.mxu0
        %643 = vdwg.mxu0
        %v644 = vmul.f32 %v641, 0.35355338
        %v645 = vsel %vm565, %v644, -inf
        %646 = vmax.xlane.f32.xlu0 %v645
        %v647 = vpop.xlane.xlu0 %646
        %v648 = vsub.f32 %v644, %v647
        %v649 = vmul.f32 %v648, 1.442695
        %v650 = vpow.pop %v649
        %v651 = vsel %vm565, %v650, 0.0
        %652 = vadd.xlane.f32.xlu0 %v651
        %v653 = vpop.xlane.xlu0 %652
        %v654 = vrcp.pop %v653
        %v655 = vmul.f32 %v650, %v654
        %v656 = vpack.c.bf16 %v655, %v655
        %657 = vrot.lane.b32.xlu0 %v561, 56
        %v658 = vpop.permute.xlu0 %657
        %v660 = vsel %vm565, %v656, 0
        %v663 = vsel %vm603, %v658, 0
        %665 = vmatpush.bf16.msra.mxu0 0
        %666 = vmatpush.bf16.msra.mxu0 0
        %667 = vmatpush.bf16.msra.mxu0 0
        %668 = vmatpush.bf16.msra.mxu0 0
        %669 = vmatpush.bf16.msra.mxu0 0
        %670 = vmatpush.bf16.msra.mxu0 0
        %671 = vmatpush.bf16.msra.mxu0 0
        %672 = vmatpush.bf16.msra.mxu0 %v663
        %673 = vmatmul.bf16.gmra.mxu0 %v660
        %v674 = vpop.f32.mrf.mxu0
        %v675 = vadd.f32 0.0, %v674
        %v676 = vpop.f32.mrf.mxu0
        %677 = vdwg.mxu0
        %679 = vrot.lane.b32.xlu0 %v675, 8
        %v680 = vpop.permute.xlu0 %679
        %vm682 = vcmask 130112
        %683 = vst.msk [vmem:[#allocation2] sm:$0xff] %vm682, %v680
        %684 = vrot.lane.b32.xlu0 %v561, 112
        %v685 = vpop.permute.xlu0 %684
        %686 = vrot.lane.b32.xlu0 %v561, 80
        %v687 = vpop.permute.xlu0 %686
        %v689 = vsel %vm565, %v685, 0
        %v692 = vsel %vm565, %v687, 0
        %694 = vmatpush.bf16.xpose.msra.mxu0 0
        %695 = vmatpush.bf16.xpose.msra.mxu0 0
        %696 = vmatpush.bf16.xpose.msra.mxu0 0
        %697 = vmatpush.bf16.xpose.msra.mxu0 0
        %698 = vmatpush.bf16.xpose.msra.mxu0 0
        %699 = vmatpush.bf16.xpose.msra.mxu0 0
        %700 = vmatpush.bf16.xpose.msra.mxu0 0
        %701 = vmatpush.bf16.xpose.msra.mxu0 %v692
        %702 = vmatmul.bf16.gmra.mxu0 %v689
        %v703 = vpop.f32.mrf.mxu0
        %v704 = vadd.f32 0.0, %v703
        %v705 = vpop.f32.mrf.mxu0
        %706 = vdwg.mxu0
        %v707 = vmul.f32 %v704, 0.35355338
        %v708 = vsel %vm565, %v707, -inf
        %709 = vmax.xlane.f32.xlu0 %v708
        %v710 = vpop.xlane.xlu0 %709
        %v711 = vsub.f32 %v707, %v710
        %v712 = vmul.f32 %v711, 1.442695
        %v713 = vpow.pop %v712
        %v714 = vsel %vm565, %v713, 0.0
        %715 = vadd.xlane.f32.xlu0 %v714
        %v716 = vpop.xlane.xlu0 %715
        %v717 = vrcp.pop %v716
        %v718 = vmul.f32 %v713, %v717
        %v719 = vpack.c.bf16 %v718, %v718
        %720 = vrot.lane.b32.xlu0 %v561, 48
        %v721 = vpop.permute.xlu0 %720
        %v723 = vsel %vm565, %v719, 0
        %v726 = vsel %vm603, %v721, 0
        %728 = vmatpush.bf16.msra.mxu0 0
        %729 = vmatpush.bf16.msra.mxu0 0
        %730 = vmatpush.bf16.msra.mxu0 0
        %731 = vmatpush.bf16.msra.mxu0 0
        %732 = vmatpush.bf16.msra.mxu0 0
        %733 = vmatpush.bf16.msra.mxu0 0
        %734 = vmatpush.bf16.msra.mxu0 0
        %735 = vmatpush.bf16.msra.mxu0 %v726
        %736 = vmatmul.bf16.gmra.mxu0 %v723
        %v737 = vpop.f32.mrf.mxu0
        %v738 = vadd.f32 0.0, %v737
        %v739 = vpop.f32.mrf.mxu0
        %740 = vdwg.mxu0
        %742 = vrot.lane.b32.xlu0 %v738, 16
        %v743 = vpop.permute.xlu0 %742
        %vm745 = vcmask 195712
        %746 = vst.msk [vmem:[#allocation2] sm:$0xff] %vm745, %v743
        %747 = vrot.lane.b32.xlu0 %v561, 104
        %v748 = vpop.permute.xlu0 %747
        %749 = vrot.lane.b32.xlu0 %v561, 72
        %v750 = vpop.permute.xlu0 %749
        %v752 = vsel %vm565, %v748, 0
        %v755 = vsel %vm565, %v750, 0
        %757 = vmatpush.bf16.xpose.msra.mxu0 0
        %758 = vmatpush.bf16.xpose.msra.mxu0 0
        %759 = vmatpush.bf16.xpose.msra.mxu0 0
        %760 = vmatpush.bf16.xpose.msra.mxu0 0
        %761 = vmatpush.bf16.xpose.msra.mxu0 0
        %762 = vmatpush.bf16.xpose.msra.mxu0 0
        %763 = vmatpush.bf16.xpose.msra.mxu0 0
        %764 = vmatpush.bf16.xpose.msra.mxu0 %v755
        %765 = vmatmul.bf16.gmra.mxu0 %v752
        %v766 = vpop.f32.mrf.mxu0
        %v767 = vadd.f32 0.0, %v766
        %v768 = vpop.f32.mrf.mxu0
        %769 = vdwg.mxu0
        %v770 = vmul.f32 %v767, 0.35355338
        %v771 = vsel %vm565, %v770, -inf
        %772 = vmax.xlane.f32.xlu0 %v771
        %v773 = vpop.xlane.xlu0 %772
        %v774 = vsub.f32 %v770, %v773
        %v775 = vmul.f32 %v774, 1.442695
        %v776 = vpow.pop %v775
        %v777 = vsel %vm565, %v776, 0.0
        %778 = vadd.xlane.f32.xlu0 %v777
        %v779 = vpop.xlane.xlu0 %778
        %v780 = vrcp.pop %v779
        %v781 = vmul.f32 %v776, %v780
        %v782 = vpack.c.bf16 %v781, %v781
        %783 = vrot.lane.b32.xlu0 %v561, 40
        %v784 = vpop.permute.xlu0 %783
        %v786 = vsel %vm565, %v782, 0
        %v789 = vsel %vm603, %v784, 0
        %791 = vmatpush.bf16.msra.mxu0 0
        %792 = vmatpush.bf16.msra.mxu0 0
        %793 = vmatpush.bf16.msra.mxu0 0
        %794 = vmatpush.bf16.msra.mxu0 0
        %795 = vmatpush.bf16.msra.mxu0 0
        %796 = vmatpush.bf16.msra.mxu0 0
        %797 = vmatpush.bf16.msra.mxu0 0
        %798 = vmatpush.bf16.msra.mxu0 %v789
        %799 = vmatmul.bf16.gmra.mxu0 %v786
        %v800 = vpop.f32.mrf.mxu0
        %v801 = vadd.f32 0.0, %v800
        %v802 = vpop.f32.mrf.mxu0
        %803 = vdwg.mxu0
        %805 = vrot.lane.b32.xlu0 %v801, 24
        %v806 = vpop.permute.xlu0 %805
        %vm808 = vcmask 261312
        %809 = vst.msk [vmem:[#allocation2] sm:$0xff] %vm808, %v806
        %v810 = vld [vmem:[#allocation2] sm:$0xff]
        %v811 = vpack.c.bf16 %v810, %v810
        %v813 = vperm.slane %v500, 0
        %v819 = vunpack.c.l.b16 %v496
        %v820 = vunpack.c.l.b16 %v497
        %v821 = vunpack.c.l.b16 %v498
        %v822 = vunpack.c.l.b16 %v499
        %v823 = vpack.c.b16 %v820, %v819
        %v824 = vpack.c.b16 %v822, %v821
        %v828 = vsel %vm520, %v811, 0
        %830 = vmatpush.bf16.msra.mxu0 0
        %831 = vmatpush.bf16.msra.mxu0 0
        %832 = vmatpush.bf16.msra.mxu0 0
        %833 = vmatpush.bf16.msra.mxu0 0
        %834 = vmatpush.bf16.msra.mxu0 0
        %835 = vmatpush.bf16.msra.mxu0 0
        %836 = vmatpush.bf16.msra.mxu0 %v824
        %837 = vmatpush.bf16.msra.mxu0 %v823
        %838 = vmatmul.bf16.gmra.mxu0 %v828
        %v839 = vpop.f32.mrf.mxu0
        %v840 = vadd.f32 %v813, %v839
        %v841 = vpop.f32.mrf.mxu0
        %842 = vdwg.mxu0
        %v843 = vadd.f32 %v528, %v840
        %v844 = vsel %vm520, %v843, 0.0
        %845 = vadd.xlane.f32.xlu0 %v844
        %v846 = vpop.xlane.xlu0 %845
        %v847 = vrcp.pop 32.0
        %v848 = vmul.f32 32.0, %v847
        %v849 = vsub.f32 1.0, %v848
        %v850 = vmul.f32 %v847, %v849
        %v851 = vadd.f32 %v847, %v850
        %vm852 = vweird.f32 %v847
        %v853 = vsel %vm852, %v847, %v851
        %v854 = vmul.f32 %v846, %v853
        %v855 = vsub.f32 %v843, %v854
        %v856 = vmul.f32 %v855, %v855
        %v857 = vsel %vm520, %v856, 0.0
        %858 = vadd.xlane.f32.xlu0 %v857
        %v859 = vpop.xlane.xlu0 %858
        %v860 = vmul.f32 %v859, %v853
        %v861 = vadd.f32 %v860, 1e-05
        %v862 = vrsqrt.pop %v861
        %v863 = vmul.f32 %v862, %v861
        %v864 = vmul.f32 %v863, %v862
        %v865 = vmul.f32 0.5, %v864
        %v866 = vsub.f32 1.5, %v865
        %v867 = vmul.f32 %v862, %v866
        %vm868 = vweird.f32 %v861
        %vm869 = vweird.f32 %v862
        %vm870 = vmor %vm868, %vm869
        %v871 = vsel %vm870, %v862, %v867
        %v872 = vmul.f32 %v855, %v871
        %v874 = vperm.slane %v501, 0
        %v876 = vmul.f32 %v872, %v874
        %v878 = vperm.slane %v502, 0
        %v880 = vadd.f32 %v876, %v878
        %v881 = vpack.c.bf16 %v880, %v880
        %v883 = vperm.slane %v507, 0
        %v889 = vunpack.c.l.b16 %v503
        %v890 = vunpack.c.l.b16 %v504
        %v891 = vunpack.c.l.b16 %v505
        %v892 = vunpack.c.l.b16 %v506
        %v893 = vpack.c.b16 %v890, %v889
        %v894 = vpack.c.b16 %v892, %v891
        %v898 = vsel %vm520, %v881, 0
        %900 = vmatpush.bf16.msra.mxu0 0
        %901 = vmatpush.bf16.msra.mxu0 0
        %902 = vmatpush.bf16.msra.mxu0 0
        %903 = vmatpush.bf16.msra.mxu0 0
        %904 = vmatpush.bf16.msra.mxu0 0
        %905 = vmatpush.bf16.msra.mxu0 0
        %906 = vmatpush.bf16.msra.mxu0 %v894
        %907 = vmatpush.bf16.msra.mxu0 %v893
        %908 = vmatmul.bf16.gmra.mxu0 %v898
        %v909 = vpop.f32.mrf.mxu0
        %v910 = vadd.f32 %v883, %v909
        %v911 = vpop.f32.mrf.mxu0
        %912 = vdwg.mxu0
        %v913 = vmax.f32 %v910, 0.0
        %v914 = vpack.c.bf16 %v913, %v913
        %v916 = vperm.slane %v516, 0
        %v926 = vunpack.c.l.b16 %v508
        %v927 = vunpack.c.l.b16 %v509
        %v928 = vunpack.c.l.b16 %v510
        %v929 = vunpack.c.l.b16 %v511
        %v930 = vunpack.c.l.b16 %v512
        %v931 = vunpack.c.l.b16 %v513
        %v932 = vunpack.c.l.b16 %v514
        %v933 = vunpack.c.l.b16 %v515
        %v934 = vpack.c.b16 %v927, %v926
        %v935 = vpack.c.b16 %v929, %v928
        %v936 = vpack.c.b16 %v931, %v930
        %v937 = vpack.c.b16 %v933, %v932
        %vm942 = vcmask 523264
        %v944 = vsel %vm942, %v914, 0
        %946 = vmatpush.bf16.msra.mxu0 0
        %947 = vmatpush.bf16.msra.mxu0 0
        %948 = vmatpush.bf16.msra.mxu0 0
        %949 = vmatpush.bf16.msra.mxu0 0
        %950 = vmatpush.bf16.msra.mxu0 %v937
        %951 = vmatpush.bf16.msra.mxu0 %v936
        %952 = vmatpush.bf16.msra.mxu0 %v935
        %953 = vmatpush.bf16.msra.mxu0 %v934
        %954 = vmatmul.bf16.gmra.mxu0 %v944
        %v955 = vpop.f32.mrf.mxu0
        %v956 = vadd.f32 %v916, %v955
        %v957 = vpop.f32.mrf.mxu0
        %958 = vdwg.mxu0
        %v959 = vadd.f32 %v880, %v956
        %v960 = vsel %vm520, %v959, 0.0
        %961 = vadd.xlane.f32.xlu0 %v960
        %v962 = vpop.xlane.xlu0 %961
        %v963 = vmul.f32 %v962, %v853
        %v964 = vsub.f32 %v959, %v963
        %v965 = vmul.f32 %v964, %v964
        %v966 = vsel %vm520, %v965, 0.0
        %967 = vadd.xlane.f32.xlu0 %v966
        %v968 = vpop.xlane.xlu0 %967
        %v969 = vmul.f32 %v968, %v853
        %v970 = vadd.f32 %v969, 1e-05
        %v971 = vrsqrt.pop %v970
        %v972 = vmul.f32 %v971, %v970
        %v973 = vmul.f32 %v972, %v971
        %v974 = vmul.f32 0.5, %v973
        %v975 = vsub.f32 1.5, %v974
        %v976 = vmul.f32 %v971, %v975
        %vm977 = vweird.f32 %v970
        %vm978 = vweird.f32 %v971
        %vm979 = vmor %vm977, %vm978
        %v980 = vsel %vm979, %v971, %v976
        %v981 = vmul.f32 %v964, %v980
        %v983 = vperm.slane %v517, 0
        %v985 = vmul.f32 %v981, %v983
        %v987 = vperm.slane %v518, 0
        %v989 = vadd.f32 %v985, %v987
        %990 = vst.msk [vmem:[%s489] sm:$0xff] %vm520, %v989
      $region85: #{self_transformer_encoder.1} parent=79 // loop_footer
        %s527 = sadd.s32 1, %s523
      $region86: #{self_transformer_encoder.1} parent=79 // loop_footer_branch
        %522 = sbr.rel target = $region82
      $region87: #{self_transformer_encoder.1} parent=79 // loop_exit
        _
      %v991 = vld [vmem:[%s489] sm:$0xff]
      %v992 = vld [vmem:[%s13] sm:$0x1]
      %v993 = vld [vmem:[%s14] sm:$0x1]
      %v994 = vsel %vm520, %v991, 0.0
      %995 = vadd.xlane.f32.xlu0 %v994
      %v996 = vpop.xlane.xlu0 %995
      %v997 = vrcp.pop 32.0
      %v998 = vmul.f32 32.0, %v997
      %v999 = vsub.f32 1.0, %v998
      %v1000 = vmul.f32 %v997, %v999
      %v1001 = vadd.f32 %v997, %v1000
      %vm1002 = vweird.f32 %v997
      %v1003 = vsel %vm1002, %v997, %v1001
      %v1004 = vmul.f32 %v996, %v1003
      %v1005 = vsub.f32 %v991, %v1004
      %v1006 = vmul.f32 %v1005, %v1005
      %v1007 = vsel %vm520, %v1006, 0.0
      %1008 = vadd.xlane.f32.xlu0 %v1007
      %v1009 = vpop.xlane.xlu0 %1008
      %v1010 = vmul.f32 %v1009, %v1003
      %v1011 = vadd.f32 %v1010, 1e-05
      %v1012 = vrsqrt.pop %v1011
      %v1013 = vmul.f32 %v1012, %v1011
      %v1014 = vmul.f32 %v1013, %v1012
      %v1015 = vmul.f32 0.5, %v1014
      %v1016 = vsub.f32 1.5, %v1015
      %v1017 = vmul.f32 %v1012, %v1016
      %vm1018 = vweird.f32 %v1011
      %vm1019 = vweird.f32 %v1012
      %vm1020 = vmor %vm1018, %vm1019
      %v1021 = vsel %vm1020, %v1012, %v1017
      %v1022 = vmul.f32 %v1005, %v1021
      %v1024 = vperm.slane %v992, 0
      %v1026 = vmul.f32 %v1022, %v1024
      %v1028 = vperm.slane %v993, 0
      %v1030 = vadd.f32 %v1026, %v1028
      %1031 = vst.msk [vmem:[%s489] sm:$0xff] %vm520, %v1030
      %p1032 = scmp.lt.s32.totalorder %s26, 1
      %s1033 = scalar_select %p1032, %s26, 1
      %s1034 = smul.addr %s1033, 8
      %s1035 = scalar_lea.vmem %s15, %s1034
      // Predicated region
      $region88: #{self_transformer_encoder.1} parent=79 // pred_check
        %p1036 = pneg %p364
      $region89: #{self_transformer_encoder.1} parent=79 // pred_check_branch
        %1038 = sbr.rel (%p1036) target = $region91
      $region90: #{self_transformer_encoder.1} parent=79 // pred_region
        _
      $region91: #{self_transformer_encoder.1} parent=79 // pred_fallthru
        _
    $region80: #{self_transformer_encoder.1} parent=5 // pred_fallthru
      _
    %p1039 = scmp.le.s32.totalorder 2, %s21
    // Predicated region
    $region92: #{self_transformer_encoder.1} parent=5 // pred_check
      %p1040 = pneg %p1039
    $region93: #{self_transformer_encoder.1} parent=5 // pred_check_branch
      %1042 = sbr.rel (%p1040) target = $region95
    $region94: #{self_transformer_encoder.1} parent=5 // pred_region
      %s1043 = ssub.s32 %s21, 2
      // Predicated region
      $region96: #{self_transformer_encoder.1} parent=94 // pred_check
        %p1044 = pneg %p370
      $region97: #{self_transformer_encoder.1} parent=94 // pred_check_branch
        %1046 = sbr.rel (%p1044) target = $region99
      $region98: #{self_transformer_encoder.1} parent=94 // pred_region
        %p1047 = scmp.lt.s32.totalorder %s27, 1
        %s1048 = scalar_select %p1047, %s27, 1
        %s1049 = smul.addr %s1048, 8
        %s1050 = scalar_lea.vmem %s15, %s1049
      $region99: #{self_transformer_encoder.1} parent=94 // pred_fallthru
        _
    $region95: #{self_transformer_encoder.1} parent=5 // pred_fallthru
      _
  $region6: #{self_transformer_encoder.1} parent=0 // loop_footer
    %s25 = sadd.s32 1, %s21
  $region7: #{self_transformer_encoder.1} parent=0 // loop_footer_branch
    %20 = sbr.rel target = $region3
  $region8: #{self_transformer_encoder.1} parent=0 // loop_exit
    _

</llo_original>
